<compile_context>
chip_gen: v7x
topology: tpu7x:2x2x1
jax: 0.10.0
libtpu: 0.0.40
codegen_flags: <defaults>
</compile_context>

<pallas_src>
import functools

import jax
import jax.numpy as jnp
import numpy as np
from jax import lax
from jax.experimental import pallas as pl
from jax.experimental.pallas import tpu as pltpu


def _round_up(x, m):
    return ((x + m - 1) // m) * m


def auvi_lstm_kernel(maxlen_ref, x_ref, len_ref, w_ih_ref, w_hh_ref, b_ref,
                     w_out_ref, b_out_ref, y_ref, gates_ref, h_ref, c_ref,
                     *, t_chunk, unroll):
    # maxlen_ref: (1,)                    i32  SMEM scalar prefetch = max(lengths)
    # x_ref:      (t_chunk*B_pad, D)      bf16 flattened time-major chunk
    # len_ref:    (B_pad, 1)              i32  (0 for padded batch rows)
    # w_ih_ref:   (D, 4H)                 bf16 (PyTorch W_ih^T, gate order i|f|g|o)
    # w_hh_ref:   (H, 4H)                 bf16 (PyTorch W_hh^T)
    # b_ref:      (1, 4H)                 f32  (b_ih + b_hh)
    # w_out_ref:  (H, OUT_pad)            bf16 (linear_1 weight^T, zero padded)
    # b_out_ref:  (1, OUT_pad)            f32
    # y_ref:      (B_pad, OUT_pad)        f32  lane-dense output slab
    # gates_ref:  (t_chunk*B_pad, 4H)     f32  VMEM scratch (per-chunk pre-gates)
    # h_ref/c_ref:(B_pad, H)              f32  VMEM state carried across chunks
    B, H = h_ref.shape
    tc = pl.program_id(0)
    chunk_start = tc * t_chunk
    n_steps = maxlen_ref[0]

    @pl.when(tc == 0)
    def _init():
        h_ref[...] = jnp.zeros_like(h_ref)
        c_ref[...] = jnp.zeros_like(c_ref)

    @pl.when(chunk_start < n_steps)
    def _chunk():
        # --- 1) Hoisted input projection for this chunk: one MXU matmul ----
        gates_ref[...] = (jnp.dot(x_ref[...], w_ih_ref[...],
                                  preferred_element_type=jnp.float32)
                          + b_ref[...])

        lengths = len_ref[...]                       # (B, 1) i32
        w_hh = w_hh_ref[...]                         # bf16, loop-resident

        # --- 2) Serial recurrence: only the small h @ W_hh dot per step ----
        def cell(s, h, c):
            row0 = pl.multiple_of(s * B, B)          # B is a multiple of 8
            gates = gates_ref[pl.ds(row0, B), :] + jnp.dot(
                h.astype(jnp.bfloat16), w_hh,
                preferred_element_type=jnp.float32)
            # Full-width EUP: sigmoid via 0.5*(tanh(0.5x)+1) -> two full-vreg
            # tanh pushes per step instead of four quarter-vreg nonlinearities.
            t_sig = jnp.tanh(0.5 * gates)
            t_g = jnp.tanh(gates)
            i_g = 0.5 * (t_sig[:, 0 * H:1 * H] + 1.0)
            f_g = 0.5 * (t_sig[:, 1 * H:2 * H] + 1.0)
            o_g = 0.5 * (t_sig[:, 3 * H:4 * H] + 1.0)
            g_g = t_g[:, 2 * H:3 * H]
            c_new = f_g * c + i_g * g_g
            h_new = o_g * jnp.tanh(c_new)
            valid = (chunk_start + s) < lengths      # (B, 1) bool
            h = jnp.where(valid, h_new, h)           # single vsel per state
            c = jnp.where(valid, c_new, c)
            return h, c

        def sub_step(k, carry):
            h, c = carry
            s0 = k * unroll
            for u in range(unroll):                  # static unroll in the body
                h, c = cell(s0 + u, h, c)
            return h, c

        h_fin, c_fin = lax.fori_loop(0, t_chunk // unroll, sub_step,
                                     (h_ref[...], c_ref[...]))
        h_ref[...] = h_fin
        c_ref[...] = c_fin

    # --- 3) Output projection (dropout is identity in eval mode) -----------
    @pl.when(tc == pl.num_programs(0) - 1)
    def _out():
        y_ref[...] = (jnp.dot(h_ref[...].astype(jnp.bfloat16), w_out_ref[...],
                              preferred_element_type=jnp.float32)
                      + b_out_ref[...])


def auvi_subnet_forward(x, lengths, params, *, unroll=8, t_chunk=64):
    """x: (B, T, in_size) f32, lengths: (B,) int. Returns (B, out_size) f32."""
    B, T, D = x.shape
    H = params["w_hh_t"].shape[0]
    out_size = params["b_out"].shape[-1]

    B_pad = _round_up(max(B, 8), 8)          # sublane-multiple batch
    OUT_pad = _round_up(out_size, 128)       # lane-dense output store

    # T-chunking: chunk length is a multiple of unroll; shrink if the per-chunk
    # pre-gate scratch would exceed ~4 MiB (keeps the kernel v7x-friendly).
    unroll = max(1, unroll)
    t_chunk = max(unroll, _round_up(min(t_chunk, _round_up(T, unroll)), unroll))
    while t_chunk > unroll and t_chunk * B_pad * 4 * H * 4 > (4 << 20):
        t_chunk = max(unroll, _round_up(t_chunk // 2, unroll))
    T_pad = _round_up(T, t_chunk)
    n_chunks = T_pad // t_chunk

    # Time-major, zero-padded, flattened in HBM (free) so the kernel never
    # reshapes a loaded VMEM value.
    x_tm = jnp.transpose(x.astype(jnp.float32), (1, 0, 2))       # (T, B, D)
    x_tm = jnp.pad(x_tm, ((0, T_pad - T), (0, B_pad - B), (0, 0)))
    x_flat = x_tm.reshape(T_pad * B_pad, D).astype(jnp.bfloat16)

    len_clamped = jnp.minimum(lengths.astype(jnp.int32), T)
    len_pad = jnp.zeros((B_pad, 1), jnp.int32).at[:B, 0].set(len_clamped)
    maxlen = jnp.max(len_pad).astype(jnp.int32).reshape(1)       # scalar prefetch

    w_ih = params["w_ih_t"].astype(jnp.bfloat16)                 # (D, 4H)
    w_hh = params["w_hh_t"].astype(jnp.bfloat16)                 # (H, 4H)
    b = params["b"].astype(jnp.float32)                          # (1, 4H)
    w_out = jnp.pad(params["w_out_t"],
                    ((0, 0), (0, OUT_pad - out_size))).astype(jnp.bfloat16)
    b_out = jnp.pad(params["b_out"],
                    ((0, 0), (0, OUT_pad - out_size))).astype(jnp.float32)

    def nbytes(shape, dtype):
        return int(np.prod(shape)) * jnp.dtype(dtype).itemsize

    # VMEM working set (x chunk is double-buffered by the pipeline).
    vmem_need = (2 * nbytes((t_chunk * B_pad, D), jnp.bfloat16)
                 + nbytes((t_chunk * B_pad, 4 * H), jnp.float32)
                 + nbytes((B_pad, 1), jnp.int32)
                 + nbytes((D, 4 * H), jnp.bfloat16)
                 + nbytes((H, 4 * H), jnp.bfloat16)
                 + nbytes((1, 4 * H), jnp.float32)
                 + nbytes((H, OUT_pad), jnp.bfloat16)
                 + nbytes((1, OUT_pad), jnp.float32)
                 + nbytes((B_pad, OUT_pad), jnp.float32)
                 + 2 * nbytes((B_pad, H), jnp.float32))
    try:
        vmem_cap = int(pltpu.get_tpu_info().vmem_capacity_bytes)
    except Exception:
        vmem_cap = 64 * 1024 * 1024          # conservative: v7x physical VMEM
    vmem_limit = int(min(int(0.75 * vmem_cap),
                         max(4 * vmem_need + (2 << 20), 8 << 20)))

    # Advisory cost estimate: flops for the three matmul phases, HBM traffic
    # for bytes_accessed (inputs + weights + output), EUP ops (2 full-width
    # tanh of 4H + tanh(c) of H per row per step).
    flops = (2 * T_pad * B_pad * D * 4 * H
             + 2 * T_pad * B_pad * H * 4 * H
             + 2 * B_pad * H * OUT_pad)
    transcendentals = 9 * T_pad * B_pad * H
    hbm_bytes = (nbytes((T_pad * B_pad, D), jnp.bfloat16)
                 + nbytes((B_pad, 1), jnp.int32) + 4
                 + nbytes((D, 4 * H), jnp.bfloat16)
                 + nbytes((H, 4 * H), jnp.bfloat16)
                 + nbytes((1, 4 * H), jnp.float32)
                 + nbytes((H, OUT_pad), jnp.bfloat16)
                 + nbytes((1, OUT_pad), jnp.float32)
                 + nbytes((B_pad, OUT_pad), jnp.float32))

    grid_spec = pltpu.PrefetchScalarGridSpec(
        num_scalar_prefetch=1,
        grid=(n_chunks,),
        in_specs=[
            pl.BlockSpec((t_chunk * B_pad, D), lambda t, ml: (t, 0)),  # x chunk
            pl.BlockSpec((B_pad, 1), lambda t, ml: (0, 0)),            # lengths
            pl.BlockSpec((D, 4 * H), lambda t, ml: (0, 0)),            # w_ih
            pl.BlockSpec((H, 4 * H), lambda t, ml: (0, 0)),            # w_hh
            pl.BlockSpec((1, 4 * H), lambda t, ml: (0, 0)),            # b
            pl.BlockSpec((H, OUT_pad), lambda t, ml: (0, 0)),          # w_out
            pl.BlockSpec((1, OUT_pad), lambda t, ml: (0, 0)),          # b_out
        ],
        out_specs=pl.BlockSpec((B_pad, OUT_pad), lambda t, ml: (0, 0)),
        scratch_shapes=[
            pltpu.VMEM((t_chunk * B_pad, 4 * H), jnp.float32),  # pre-gates
            pltpu.VMEM((B_pad, H), jnp.float32),                # h state
            pltpu.VMEM((B_pad, H), jnp.float32),                # c state
        ],
    )

    y_full = pl.pallas_call(
        functools.partial(auvi_lstm_kernel, t_chunk=t_chunk, unroll=unroll),
        out_shape=jax.ShapeDtypeStruct((B_pad, OUT_pad), jnp.float32),
        grid_spec=grid_spec,
        compiler_params=pltpu.CompilerParams(
            dimension_semantics=("arbitrary",),     # state carried across chunks
            vmem_limit_bytes=vmem_limit),
        cost_estimate=pl.CostEstimate(flops=flops,
                                      transcendentals=transcendentals,
                                      bytes_accessed=hbm_bytes),
    )(maxlen, x_flat, len_pad, w_ih, w_hh, b, w_out, b_out)

    return y_full[:B, :out_size]


def init_params(key, in_size, hidden_size, out_size):
    """Deterministic init matching PyTorch LSTM/Linear shapes (uniform +-1/sqrt(H))."""
    k = 1.0 / np.sqrt(hidden_size)
    keys = jax.random.split(key, 6)
    w_ih = jax.random.uniform(keys[0], (4 * hidden_size, in_size), minval=-k, maxval=k)
    w_hh = jax.random.uniform(keys[1], (4 * hidden_size, hidden_size), minval=-k, maxval=k)
    b_ih = jax.random.uniform(keys[2], (4 * hidden_size,), minval=-k, maxval=k)
    b_hh = jax.random.uniform(keys[3], (4 * hidden_size,), minval=-k, maxval=k)
    w_lin = jax.random.uniform(keys[4], (out_size, hidden_size), minval=-k, maxval=k)
    b_lin = jax.random.uniform(keys[5], (out_size,), minval=-k, maxval=k)
    return {
        "w_ih_t": w_ih.T.astype(jnp.float32),                     # (in, 4H)
        "w_hh_t": w_hh.T.astype(jnp.float32),                     # (H, 4H)
        "b": (b_ih + b_hh).reshape(1, -1).astype(jnp.float32),    # (1, 4H)
        "w_out_t": w_lin.T.astype(jnp.float32),                   # (H, out)
        "b_out": b_lin.reshape(1, -1).astype(jnp.float32),        # (1, out)
    }


def reference_forward(x, lengths, p):
    """Pure-JAX reference mirroring the kernel's bf16-matmul / f32-accumulate math."""
    B, T, D = x.shape
    H = p["w_hh_t"].shape[0]
    w_ih = p["w_ih_t"].astype(jnp.bfloat16)
    w_hh = p["w_hh_t"].astype(jnp.bfloat16)
    w_out = p["w_out_t"].astype(jnp.bfloat16)
    h = jnp.zeros((B, H), jnp.float32)
    c = jnp.zeros((B, H), jnp.float32)
    for t in range(T):
        gates = (jnp.dot(x[:, t, :].astype(jnp.bfloat16), w_ih,
                         preferred_element_type=jnp.float32)
                 + jnp.dot(h.astype(jnp.bfloat16), w_hh,
                           preferred_element_type=jnp.float32)
                 + p["b"])
        i = jax.nn.sigmoid(gates[:, :H])
        f = jax.nn.sigmoid(gates[:, H:2 * H])
        g = jnp.tanh(gates[:, 2 * H:3 * H])
        o = jax.nn.sigmoid(gates[:, 3 * H:])
        c_new = f * c + i * g
        h_new = o * jnp.tanh(c_new)
        valid = (t < lengths)[:, None]
        h = jnp.where(valid, h_new, h)
        c = jnp.where(valid, c_new, c)
    return (jnp.dot(h.astype(jnp.bfloat16), w_out,
                    preferred_element_type=jnp.float32) + p["b_out"])


if __name__ == "__main__":
    # Small shapes consistent with AuViSubNet's forward.
    B, T, IN, HID, OUT = 2, 8, 16, 32, 16
    key = jax.random.PRNGKey(0)
    kx, kp = jax.random.split(key)

    x = jax.random.normal(kx, (B, T, IN), dtype=jnp.float32)
    lengths = jnp.array([8, 5], dtype=jnp.int32)   # variable sequence lengths
    params = init_params(kp, IN, HID, OUT)

    y = auvi_subnet_forward(x, lengths, params)
    y = jax.block_until_ready(y)

    y_ref = reference_forward(x, lengths, params)
    np.testing.assert_allclose(np.asarray(y), np.asarray(y_ref),
                               rtol=2e-2, atol=2e-2)

    print("KERNEL_OK")
</pallas_src>

<mosaic_0001>
module attributes {stable_mosaic.version = 11 : i64} {
  func.func @auvi_lstm_kernel(%arg0: i32, %arg1: memref<1xi32, #tpu.memory_space<smem>>, %arg2: memref<64x16xbf16, #tpu.memory_space<vmem>>, %arg3: memref<8x1xi32, #tpu.memory_space<vmem>>, %arg4: memref<16x128xbf16, #tpu.memory_space<vmem>>, %arg5: memref<32x128xbf16, #tpu.memory_space<vmem>>, %arg6: memref<1x128xf32, #tpu.memory_space<vmem>>, %arg7: memref<32x128xbf16, #tpu.memory_space<vmem>>, %arg8: memref<1x128xf32, #tpu.memory_space<vmem>>, %arg9: memref<8x128xf32, #tpu.memory_space<vmem>>, %arg10: memref<64x128xf32, #tpu.memory_space<vmem>>, %arg11: memref<8x32xf32, #tpu.memory_space<vmem>>, %arg12: memref<8x32xf32, #tpu.memory_space<vmem>>) attributes {dimension_semantics = [#tpu.dimension_semantics<arbitrary>], iteration_bounds = array<i64: 1>, scalar_prefetch = 1 : i64, scratch_operands = 3 : i64, tpu.core_type = #tpu.core_type<tc>, window_params = [{transform_indices = @transform_0, window_bounds = array<i64: 64, 16>}, {pipeline_mode = #tpu.pipeline_mode<synchronous>, transform_indices = @transform_1, window_bounds = array<i64: 8, 1>}, {pipeline_mode = #tpu.pipeline_mode<synchronous>, transform_indices = @transform_2, window_bounds = array<i64: 16, 128>}, {pipeline_mode = #tpu.pipeline_mode<synchronous>, transform_indices = @transform_3, window_bounds = array<i64: 32, 128>}, {pipeline_mode = #tpu.pipeline_mode<synchronous>, transform_indices = @transform_4, window_bounds = array<i64: 1, 128>}, {pipeline_mode = #tpu.pipeline_mode<synchronous>, transform_indices = @transform_5, window_bounds = array<i64: 32, 128>}, {pipeline_mode = #tpu.pipeline_mode<synchronous>, transform_indices = @transform_6, window_bounds = array<i64: 1, 128>}, {pipeline_mode = #tpu.pipeline_mode<synchronous>, transform_indices = @transform_7, window_bounds = array<i64: 8, 128>}]} {
    %c8_i32 = arith.constant 8 : i32
    %0 = arith.muli %arg0, %c8_i32 : i32
    %c0 = arith.constant 0 : index
    %1 = memref.load %arg1[%c0] : memref<1xi32, #tpu.memory_space<smem>>
    %c0_i32 = arith.constant 0 : i32
    %2 = arith.cmpi eq, %arg0, %c0_i32 : i32
    %3 = arith.extui %2 : i1 to i32
    %c0_i32_0 = arith.constant 0 : i32
    %4 = arith.cmpi ne, %3, %c0_i32_0 : i32
    scf.if %4 {
      %cst = arith.constant 0.000000e+00 : f32
      %11 = vector.broadcast %cst : f32 to vector<8x32xf32>
      %c0_4 = arith.constant 0 : index
      %c0_5 = arith.constant 0 : index
      %12 = vector.load %arg11[%c0_4, %c0_5] : memref<8x32xf32, #tpu.memory_space<vmem>>, vector<8x32xf32>
      tpu.vector_store %arg11[%c0_4, %c0_5], %11 {strides = array<i32>} : memref<8x32xf32, #tpu.memory_space<vmem>>, vector<8x32xf32>,
      %cst_6 = arith.constant 0.000000e+00 : f32
      %13 = vector.broadcast %cst_6 : f32 to vector<8x32xf32>
      %c0_7 = arith.constant 0 : index
      %c0_8 = arith.constant 0 : index
      %14 = vector.load %arg12[%c0_7, %c0_8] : memref<8x32xf32, #tpu.memory_space<vmem>>, vector<8x32xf32>
      tpu.vector_store %arg12[%c0_7, %c0_8], %13 {strides = array<i32>} : memref<8x32xf32, #tpu.memory_space<vmem>>, vector<8x32xf32>,
    } else {
    }
    %5 = arith.cmpi slt, %0, %1 : i32
    %6 = arith.extui %5 : i1 to i32
    %c0_i32_1 = arith.constant 0 : i32
    %7 = arith.cmpi ne, %6, %c0_i32_1 : i32
    scf.if %7 {
      %c0_4 = arith.constant 0 : index
      %c0_5 = arith.constant 0 : index
      %11 = vector.load %arg2[%c0_4, %c0_5] : memref<64x16xbf16, #tpu.memory_space<vmem>>, vector<64x16xbf16>
      %c0_6 = arith.constant 0 : index
      %c0_7 = arith.constant 0 : index
      %12 = vector.load %arg4[%c0_6, %c0_7] : memref<16x128xbf16, #tpu.memory_space<vmem>>, vector<16x128xbf16>
      %cst = arith.constant dense<0.000000e+00> : vector<64x128xf32>
      %13 = tpu.matmul %11, %12, %cst {dimension_numbers = #tpu.dot_dimension_numbers<[1], [0], [0], [1], [0, 0, 1, 1], [], []>} : vector<64x16xbf16>, vector<16x128xbf16>, vector<64x128xf32> -> vector<64x128xf32>
      %c0_8 = arith.constant 0 : index
      %c0_9 = arith.constant 0 : index
      %14 = vector.load %arg6[%c0_8, %c0_9] : memref<1x128xf32, #tpu.memory_space<vmem>>, vector<1x128xf32>
      %15 = vector.broadcast %14 : vector<1x128xf32> to vector<64x128xf32>
      %16 = arith.addf %13, %15 : vector<64x128xf32>
      %c0_10 = arith.constant 0 : index
      %c0_11 = arith.constant 0 : index
      %17 = vector.load %arg10[%c0_10, %c0_11] : memref<64x128xf32, #tpu.memory_space<vmem>>, vector<64x128xf32>
      tpu.vector_store %arg10[%c0_10, %c0_11], %16 {strides = array<i32>} : memref<64x128xf32, #tpu.memory_space<vmem>>, vector<64x128xf32>,
      %c0_12 = arith.constant 0 : index
      %c0_13 = arith.constant 0 : index
      %18 = vector.load %arg3[%c0_12, %c0_13] : memref<8x1xi32, #tpu.memory_space<vmem>>, vector<8x1xi32>
      %c0_14 = arith.constant 0 : index
      %c0_15 = arith.constant 0 : index
      %19 = vector.load %arg5[%c0_14, %c0_15] : memref<32x128xbf16, #tpu.memory_space<vmem>>, vector<32x128xbf16>
      %c0_16 = arith.constant 0 : index
      %c0_17 = arith.constant 0 : index
      %20 = vector.load %arg11[%c0_16, %c0_17] : memref<8x32xf32, #tpu.memory_space<vmem>>, vector<8x32xf32>
      %c0_18 = arith.constant 0 : index
      %c0_19 = arith.constant 0 : index
      %21 = vector.load %arg12[%c0_18, %c0_19] : memref<8x32xf32, #tpu.memory_space<vmem>>, vector<8x32xf32>
      %c0_i32_20 = arith.constant 0 : i32
      %c8_i32_21 = arith.constant 8 : i32
      %22 = arith.muli %c0_i32_20, %c8_i32_21 : i32
      %c0_i32_22 = arith.constant 0 : i32
      %23 = arith.addi %22, %c0_i32_22 : i32
      %c8_i32_23 = arith.constant 8 : i32
      %24 = arith.muli %23, %c8_i32_23 : i32
      %25 = tpu.assume_multiple %24, 8 : i32
      %26 = arith.index_cast %25 : i32 to index
      %c0_24 = arith.constant 0 : index
      %27 = vector.load %arg10[%26, %c0_24] : memref<64x128xf32, #tpu.memory_space<vmem>>, vector<8x128xf32>
      %28 = arith.truncf %20 : vector<8x32xf32> to vector<8x32xbf16>
      %cst_25 = arith.constant dense<0.000000e+00> : vector<8x128xf32>
      %29 = tpu.matmul %28, %19, %cst_25 {dimension_numbers = #tpu.dot_dimension_numbers<[1], [0], [0], [1], [0, 0, 1, 1], [], []>} : vector<8x32xbf16>, vector<32x128xbf16>, vector<8x128xf32> -> vector<8x128xf32>
      %30 = arith.addf %27, %29 : vector<8x128xf32>
      %cst_26 = arith.constant 5.000000e-01 : f32
      %31 = vector.broadcast %cst_26 : f32 to vector<8x128xf32>
      %32 = arith.mulf %31, %30 : vector<8x128xf32>
      %33 = math.tanh %32 : vector<8x128xf32>
      %34 = math.tanh %30 : vector<8x128xf32>
      %35 = vector.extract_strided_slice %33 {offsets = [0, 0], sizes = [8, 32], strides = [1, 1]} : vector<8x128xf32> to vector<8x32xf32>
      %cst_27 = arith.constant 1.000000e+00 : f32
      %36 = vector.broadcast %cst_27 : f32 to vector<8x32xf32>
      %37 = arith.addf %35, %36 : vector<8x32xf32>
      %cst_28 = arith.constant 5.000000e-01 : f32
      %38 = vector.broadcast %cst_28 : f32 to vector<8x32xf32>
      %39 = arith.mulf %38, %37 : vector<8x32xf32>
      %40 = vector.extract_strided_slice %33 {offsets = [0, 32], sizes = [8, 32], strides = [1, 1]} : vector<8x128xf32> to vector<8x32xf32>
      %cst_29 = arith.constant 1.000000e+00 : f32
      %41 = vector.broadcast %cst_29 : f32 to vector<8x32xf32>
      %42 = arith.addf %40, %41 : vector<8x32xf32>
      %cst_30 = arith.constant 5.000000e-01 : f32
      %43 = vector.broadcast %cst_30 : f32 to vector<8x32xf32>
      %44 = arith.mulf %43, %42 : vector<8x32xf32>
      %45 = vector.extract_strided_slice %33 {offsets = [0, 96], sizes = [8, 32], strides = [1, 1]} : vector<8x128xf32> to vector<8x32xf32>
      %cst_31 = arith.constant 1.000000e+00 : f32
      %46 = vector.broadcast %cst_31 : f32 to vector<8x32xf32>
      %47 = arith.addf %45, %46 : vector<8x32xf32>
      %cst_32 = arith.constant 5.000000e-01 : f32
      %48 = vector.broadcast %cst_32 : f32 to vector<8x32xf32>
      %49 = arith.mulf %48, %47 : vector<8x32xf32>
      %50 = vector.extract_strided_slice %34 {offsets = [0, 64], sizes = [8, 32], strides = [1, 1]} : vector<8x128xf32> to vector<8x32xf32>
      %51 = arith.mulf %44, %21 : vector<8x32xf32>
      %52 = arith.mulf %39, %50 : vector<8x32xf32>
      %53 = arith.addf %51, %52 : vector<8x32xf32>
      %54 = math.tanh %53 : vector<8x32xf32>
      %55 = arith.mulf %49, %54 : vector<8x32xf32>
      %56 = arith.addi %0, %23 : i32
      %57 = vector.broadcast %56 : i32 to vector<8x1xi32>
      %58 = arith.cmpi slt, %57, %18 : vector<8x1xi32>
      %59 = vector.shape_cast %58 : vector<8x1xi1> to vector<8x1xi1>
      %60 = vector.broadcast %59 : vector<8x1xi1> to vector<8x32xi1>
      %61 = arith.select %60, %55, %20 : vector<8x32xi1>, vector<8x32xf32>
      %62 = vector.shape_cast %58 : vector<8x1xi1> to vector<8x1xi1>
      %63 = vector.broadcast %62 : vector<8x1xi1> to vector<8x32xi1>
      %64 = arith.select %63, %53, %21 : vector<8x32xi1>, vector<8x32xf32>
      %c1_i32 = arith.constant 1 : i32
      %65 = arith.addi %22, %c1_i32 : i32
      %c8_i32_33 = arith.constant 8 : i32
      %66 = arith.muli %65, %c8_i32_33 : i32
      %67 = tpu.assume_multiple %66, 8 : i32
      %68 = arith.index_cast %67 : i32 to index
      %c0_34 = arith.constant 0 : index
      %69 = vector.load %arg10[%68, %c0_34] : memref<64x128xf32, #tpu.memory_space<vmem>>, vector<8x128xf32>
      %70 = arith.truncf %61 : vector<8x32xf32> to vector<8x32xbf16>
      %cst_35 = arith.constant dense<0.000000e+00> : vector<8x128xf32>
      %71 = tpu.matmul %70, %19, %cst_35 {dimension_numbers = #tpu.dot_dimension_numbers<[1], [0], [0], [1], [0, 0, 1, 1], [], []>} : vector<8x32xbf16>, vector<32x128xbf16>, vector<8x128xf32> -> vector<8x128xf32>
      %72 = arith.addf %69, %71 : vector<8x128xf32>
      %cst_36 = arith.constant 5.000000e-01 : f32
      %73 = vector.broadcast %cst_36 : f32 to vector<8x128xf32>
      %74 = arith.mulf %73, %72 : vector<8x128xf32>
      %75 = math.tanh %74 : vector<8x128xf32>
      %76 = math.tanh %72 : vector<8x128xf32>
      %77 = vector.extract_strided_slice %75 {offsets = [0, 0], sizes = [8, 32], strides = [1, 1]} : vector<8x128xf32> to vector<8x32xf32>
      %cst_37 = arith.constant 1.000000e+00 : f32
      %78 = vector.broadcast %cst_37 : f32 to vector<8x32xf32>
      %79 = arith.addf %77, %78 : vector<8x32xf32>
      %cst_38 = arith.constant 5.000000e-01 : f32
      %80 = vector.broadcast %cst_38 : f32 to vector<8x32xf32>
      %81 = arith.mulf %80, %79 : vector<8x32xf32>
      %82 = vector.extract_strided_slice %75 {offsets = [0, 32], sizes = [8, 32], strides = [1, 1]} : vector<8x128xf32> to vector<8x32xf32>
      %cst_39 = arith.constant 1.000000e+00 : f32
      %83 = vector.broadcast %cst_39 : f32 to vector<8x32xf32>
      %84 = arith.addf %82, %83 : vector<8x32xf32>
      %cst_40 = arith.constant 5.000000e-01 : f32
      %85 = vector.broadcast %cst_40 : f32 to vector<8x32xf32>
      %86 = arith.mulf %85, %84 : vector<8x32xf32>
      %87 = vector.extract_strided_slice %75 {offsets = [0, 96], sizes = [8, 32], strides = [1, 1]} : vector<8x128xf32> to vector<8x32xf32>
      %cst_41 = arith.constant 1.000000e+00 : f32
      %88 = vector.broadcast %cst_41 : f32 to vector<8x32xf32>
      %89 = arith.addf %87, %88 : vector<8x32xf32>
      %cst_42 = arith.constant 5.000000e-01 : f32
      %90 = vector.broadcast %cst_42 : f32 to vector<8x32xf32>
      %91 = arith.mulf %90, %89 : vector<8x32xf32>
      %92 = vector.extract_strided_slice %76 {offsets = [0, 64], sizes = [8, 32], strides = [1, 1]} : vector<8x128xf32> to vector<8x32xf32>
      %93 = arith.mulf %86, %64 : vector<8x32xf32>
      %94 = arith.mulf %81, %92 : vector<8x32xf32>
      %95 = arith.addf %93, %94 : vector<8x32xf32>
      %96 = math.tanh %95 : vector<8x32xf32>
      %97 = arith.mulf %91, %96 : vector<8x32xf32>
      %98 = arith.addi %0, %65 : i32
      %99 = vector.broadcast %98 : i32 to vector<8x1xi32>
      %100 = arith.cmpi slt, %99, %18 : vector<8x1xi32>
      %101 = vector.shape_cast %100 : vector<8x1xi1> to vector<8x1xi1>
      %102 = vector.broadcast %101 : vector<8x1xi1> to vector<8x32xi1>
      %103 = arith.select %102, %97, %61 : vector<8x32xi1>, vector<8x32xf32>
      %104 = vector.shape_cast %100 : vector<8x1xi1> to vector<8x1xi1>
      %105 = vector.broadcast %104 : vector<8x1xi1> to vector<8x32xi1>
      %106 = arith.select %105, %95, %64 : vector<8x32xi1>, vector<8x32xf32>
      %c2_i32 = arith.constant 2 : i32
      %107 = arith.addi %22, %c2_i32 : i32
      %c8_i32_43 = arith.constant 8 : i32
      %108 = arith.muli %107, %c8_i32_43 : i32
      %109 = tpu.assume_multiple %108, 8 : i32
      %110 = arith.index_cast %109 : i32 to index
      %c0_44 = arith.constant 0 : index
      %111 = vector.load %arg10[%110, %c0_44] : memref<64x128xf32, #tpu.memory_space<vmem>>, vector<8x128xf32>
      %112 = arith.truncf %103 : vector<8x32xf32> to vector<8x32xbf16>
      %cst_45 = arith.constant dense<0.000000e+00> : vector<8x128xf32>
      %113 = tpu.matmul %112, %19, %cst_45 {dimension_numbers = #tpu.dot_dimension_numbers<[1], [0], [0], [1], [0, 0, 1, 1], [], []>} : vector<8x32xbf16>, vector<32x128xbf16>, vector<8x128xf32> -> vector<8x128xf32>
      %114 = arith.addf %111, %113 : vector<8x128xf32>
      %cst_46 = arith.constant 5.000000e-01 : f32
      %115 = vector.broadcast %cst_46 : f32 to vector<8x128xf32>
      %116 = arith.mulf %115, %114 : vector<8x128xf32>
      %117 = math.tanh %116 : vector<8x128xf32>
      %118 = math.tanh %114 : vector<8x128xf32>
      %119 = vector.extract_strided_slice %117 {offsets = [0, 0], sizes = [8, 32], strides = [1, 1]} : vector<8x128xf32> to vector<8x32xf32>
      %cst_47 = arith.constant 1.000000e+00 : f32
      %120 = vector.broadcast %cst_47 : f32 to vector<8x32xf32>
      %121 = arith.addf %119, %120 : vector<8x32xf32>
      %cst_48 = arith.constant 5.000000e-01 : f32
      %122 = vector.broadcast %cst_48 : f32 to vector<8x32xf32>
      %123 = arith.mulf %122, %121 : vector<8x32xf32>
      %124 = vector.extract_strided_slice %117 {offsets = [0, 32], sizes = [8, 32], strides = [1, 1]} : vector<8x128xf32> to vector<8x32xf32>
      %cst_49 = arith.constant 1.000000e+00 : f32
      %125 = vector.broadcast %cst_49 : f32 to vector<8x32xf32>
      %126 = arith.addf %124, %125 : vector<8x32xf32>
      %cst_50 = arith.constant 5.000000e-01 : f32
      %127 = vector.broadcast %cst_50 : f32 to vector<8x32xf32>
      %128 = arith.mulf %127, %126 : vector<8x32xf32>
      %129 = vector.extract_strided_slice %117 {offsets = [0, 96], sizes = [8, 32], strides = [1, 1]} : vector<8x128xf32> to vector<8x32xf32>
      %cst_51 = arith.constant 1.000000e+00 : f32
      %130 = vector.broadcast %cst_51 : f32 to vector<8x32xf32>
      %131 = arith.addf %129, %130 : vector<8x32xf32>
      %cst_52 = arith.constant 5.000000e-01 : f32
      %132 = vector.broadcast %cst_52 : f32 to vector<8x32xf32>
      %133 = arith.mulf %132, %131 : vector<8x32xf32>
      %134 = vector.extract_strided_slice %118 {offsets = [0, 64], sizes = [8, 32], strides = [1, 1]} : vector<8x128xf32> to vector<8x32xf32>
      %135 = arith.mulf %128, %106 : vector<8x32xf32>
      %136 = arith.mulf %123, %134 : vector<8x32xf32>
      %137 = arith.addf %135, %136 : vector<8x32xf32>
      %138 = math.tanh %137 : vector<8x32xf32>
      %139 = arith.mulf %133, %138 : vector<8x32xf32>
      %140 = arith.addi %0, %107 : i32
      %141 = vector.broadcast %140 : i32 to vector<8x1xi32>
      %142 = arith.cmpi slt, %141, %18 : vector<8x1xi32>
      %143 = vector.shape_cast %142 : vector<8x1xi1> to vector<8x1xi1>
      %144 = vector.broadcast %143 : vector<8x1xi1> to vector<8x32xi1>
      %145 = arith.select %144, %139, %103 : vector<8x32xi1>, vector<8x32xf32>
      %146 = vector.shape_cast %142 : vector<8x1xi1> to vector<8x1xi1>
      %147 = vector.broadcast %146 : vector<8x1xi1> to vector<8x32xi1>
      %148 = arith.select %147, %137, %106 : vector<8x32xi1>, vector<8x32xf32>
      %c3_i32 = arith.constant 3 : i32
      %149 = arith.addi %22, %c3_i32 : i32
      %c8_i32_53 = arith.constant 8 : i32
      %150 = arith.muli %149, %c8_i32_53 : i32
      %151 = tpu.assume_multiple %150, 8 : i32
      %152 = arith.index_cast %151 : i32 to index
      %c0_54 = arith.constant 0 : index
      %153 = vector.load %arg10[%152, %c0_54] : memref<64x128xf32, #tpu.memory_space<vmem>>, vector<8x128xf32>
      %154 = arith.truncf %145 : vector<8x32xf32> to vector<8x32xbf16>
      %cst_55 = arith.constant dense<0.000000e+00> : vector<8x128xf32>
      %155 = tpu.matmul %154, %19, %cst_55 {dimension_numbers = #tpu.dot_dimension_numbers<[1], [0], [0], [1], [0, 0, 1, 1], [], []>} : vector<8x32xbf16>, vector<32x128xbf16>, vector<8x128xf32> -> vector<8x128xf32>
      %156 = arith.addf %153, %155 : vector<8x128xf32>
      %cst_56 = arith.constant 5.000000e-01 : f32
      %157 = vector.broadcast %cst_56 : f32 to vector<8x128xf32>
      %158 = arith.mulf %157, %156 : vector<8x128xf32>
      %159 = math.tanh %158 : vector<8x128xf32>
      %160 = math.tanh %156 : vector<8x128xf32>
      %161 = vector.extract_strided_slice %159 {offsets = [0, 0], sizes = [8, 32], strides = [1, 1]} : vector<8x128xf32> to vector<8x32xf32>
      %cst_57 = arith.constant 1.000000e+00 : f32
      %162 = vector.broadcast %cst_57 : f32 to vector<8x32xf32>
      %163 = arith.addf %161, %162 : vector<8x32xf32>
      %cst_58 = arith.constant 5.000000e-01 : f32
      %164 = vector.broadcast %cst_58 : f32 to vector<8x32xf32>
      %165 = arith.mulf %164, %163 : vector<8x32xf32>
      %166 = vector.extract_strided_slice %159 {offsets = [0, 32], sizes = [8, 32], strides = [1, 1]} : vector<8x128xf32> to vector<8x32xf32>
      %cst_59 = arith.constant 1.000000e+00 : f32
      %167 = vector.broadcast %cst_59 : f32 to vector<8x32xf32>
      %168 = arith.addf %166, %167 : vector<8x32xf32>
      %cst_60 = arith.constant 5.000000e-01 : f32
      %169 = vector.broadcast %cst_60 : f32 to vector<8x32xf32>
      %170 = arith.mulf %169, %168 : vector<8x32xf32>
      %171 = vector.extract_strided_slice %159 {offsets = [0, 96], sizes = [8, 32], strides = [1, 1]} : vector<8x128xf32> to vector<8x32xf32>
      %cst_61 = arith.constant 1.000000e+00 : f32
      %172 = vector.broadcast %cst_61 : f32 to vector<8x32xf32>
      %173 = arith.addf %171, %172 : vector<8x32xf32>
      %cst_62 = arith.constant 5.000000e-01 : f32
      %174 = vector.broadcast %cst_62 : f32 to vector<8x32xf32>
      %175 = arith.mulf %174, %173 : vector<8x32xf32>
      %176 = vector.extract_strided_slice %160 {offsets = [0, 64], sizes = [8, 32], strides = [1, 1]} : vector<8x128xf32> to vector<8x32xf32>
      %177 = arith.mulf %170, %148 : vector<8x32xf32>
      %178 = arith.mulf %165, %176 : vector<8x32xf32>
      %179 = arith.addf %177, %178 : vector<8x32xf32>
      %180 = math.tanh %179 : vector<8x32xf32>
      %181 = arith.mulf %175, %180 : vector<8x32xf32>
      %182 = arith.addi %0, %149 : i32
      %183 = vector.broadcast %182 : i32 to vector<8x1xi32>
      %184 = arith.cmpi slt, %183, %18 : vector<8x1xi32>
      %185 = vector.shape_cast %184 : vector<8x1xi1> to vector<8x1xi1>
      %186 = vector.broadcast %185 : vector<8x1xi1> to vector<8x32xi1>
      %187 = arith.select %186, %181, %145 : vector<8x32xi1>, vector<8x32xf32>
      %188 = vector.shape_cast %184 : vector<8x1xi1> to vector<8x1xi1>
      %189 = vector.broadcast %188 : vector<8x1xi1> to vector<8x32xi1>
      %190 = arith.select %189, %179, %148 : vector<8x32xi1>, vector<8x32xf32>
      %c4_i32 = arith.constant 4 : i32
      %191 = arith.addi %22, %c4_i32 : i32
      %c8_i32_63 = arith.constant 8 : i32
      %192 = arith.muli %191, %c8_i32_63 : i32
      %193 = tpu.assume_multiple %192, 8 : i32
      %194 = arith.index_cast %193 : i32 to index
      %c0_64 = arith.constant 0 : index
      %195 = vector.load %arg10[%194, %c0_64] : memref<64x128xf32, #tpu.memory_space<vmem>>, vector<8x128xf32>
      %196 = arith.truncf %187 : vector<8x32xf32> to vector<8x32xbf16>
      %cst_65 = arith.constant dense<0.000000e+00> : vector<8x128xf32>
      %197 = tpu.matmul %196, %19, %cst_65 {dimension_numbers = #tpu.dot_dimension_numbers<[1], [0], [0], [1], [0, 0, 1, 1], [], []>} : vector<8x32xbf16>, vector<32x128xbf16>, vector<8x128xf32> -> vector<8x128xf32>
      %198 = arith.addf %195, %197 : vector<8x128xf32>
      %cst_66 = arith.constant 5.000000e-01 : f32
      %199 = vector.broadcast %cst_66 : f32 to vector<8x128xf32>
      %200 = arith.mulf %199, %198 : vector<8x128xf32>
      %201 = math.tanh %200 : vector<8x128xf32>
      %202 = math.tanh %198 : vector<8x128xf32>
      %203 = vector.extract_strided_slice %201 {offsets = [0, 0], sizes = [8, 32], strides = [1, 1]} : vector<8x128xf32> to vector<8x32xf32>
      %cst_67 = arith.constant 1.000000e+00 : f32
      %204 = vector.broadcast %cst_67 : f32 to vector<8x32xf32>
      %205 = arith.addf %203, %204 : vector<8x32xf32>
      %cst_68 = arith.constant 5.000000e-01 : f32
      %206 = vector.broadcast %cst_68 : f32 to vector<8x32xf32>
      %207 = arith.mulf %206, %205 : vector<8x32xf32>
      %208 = vector.extract_strided_slice %201 {offsets = [0, 32], sizes = [8, 32], strides = [1, 1]} : vector<8x128xf32> to vector<8x32xf32>
      %cst_69 = arith.constant 1.000000e+00 : f32
      %209 = vector.broadcast %cst_69 : f32 to vector<8x32xf32>
      %210 = arith.addf %208, %209 : vector<8x32xf32>
      %cst_70 = arith.constant 5.000000e-01 : f32
      %211 = vector.broadcast %cst_70 : f32 to vector<8x32xf32>
      %212 = arith.mulf %211, %210 : vector<8x32xf32>
      %213 = vector.extract_strided_slice %201 {offsets = [0, 96], sizes = [8, 32], strides = [1, 1]} : vector<8x128xf32> to vector<8x32xf32>
      %cst_71 = arith.constant 1.000000e+00 : f32
      %214 = vector.broadcast %cst_71 : f32 to vector<8x32xf32>
      %215 = arith.addf %213, %214 : vector<8x32xf32>
      %cst_72 = arith.constant 5.000000e-01 : f32
      %216 = vector.broadcast %cst_72 : f32 to vector<8x32xf32>
      %217 = arith.mulf %216, %215 : vector<8x32xf32>
      %218 = vector.extract_strided_slice %202 {offsets = [0, 64], sizes = [8, 32], strides = [1, 1]} : vector<8x128xf32> to vector<8x32xf32>
      %219 = arith.mulf %212, %190 : vector<8x32xf32>
      %220 = arith.mulf %207, %218 : vector<8x32xf32>
      %221 = arith.addf %219, %220 : vector<8x32xf32>
      %222 = math.tanh %221 : vector<8x32xf32>
      %223 = arith.mulf %217, %222 : vector<8x32xf32>
      %224 = arith.addi %0, %191 : i32
      %225 = vector.broadcast %224 : i32 to vector<8x1xi32>
      %226 = arith.cmpi slt, %225, %18 : vector<8x1xi32>
      %227 = vector.shape_cast %226 : vector<8x1xi1> to vector<8x1xi1>
      %228 = vector.broadcast %227 : vector<8x1xi1> to vector<8x32xi1>
      %229 = arith.select %228, %223, %187 : vector<8x32xi1>, vector<8x32xf32>
      %230 = vector.shape_cast %226 : vector<8x1xi1> to vector<8x1xi1>
      %231 = vector.broadcast %230 : vector<8x1xi1> to vector<8x32xi1>
      %232 = arith.select %231, %221, %190 : vector<8x32xi1>, vector<8x32xf32>
      %c5_i32 = arith.constant 5 : i32
      %233 = arith.addi %22, %c5_i32 : i32
      %c8_i32_73 = arith.constant 8 : i32
      %234 = arith.muli %233, %c8_i32_73 : i32
      %235 = tpu.assume_multiple %234, 8 : i32
      %236 = arith.index_cast %235 : i32 to index
      %c0_74 = arith.constant 0 : index
      %237 = vector.load %arg10[%236, %c0_74] : memref<64x128xf32, #tpu.memory_space<vmem>>, vector<8x128xf32>
      %238 = arith.truncf %229 : vector<8x32xf32> to vector<8x32xbf16>
      %cst_75 = arith.constant dense<0.000000e+00> : vector<8x128xf32>
      %239 = tpu.matmul %238, %19, %cst_75 {dimension_numbers = #tpu.dot_dimension_numbers<[1], [0], [0], [1], [0, 0, 1, 1], [], []>} : vector<8x32xbf16>, vector<32x128xbf16>, vector<8x128xf32> -> vector<8x128xf32>
      %240 = arith.addf %237, %239 : vector<8x128xf32>
      %cst_76 = arith.constant 5.000000e-01 : f32
      %241 = vector.broadcast %cst_76 : f32 to vector<8x128xf32>
      %242 = arith.mulf %241, %240 : vector<8x128xf32>
      %243 = math.tanh %242 : vector<8x128xf32>
      %244 = math.tanh %240 : vector<8x128xf32>
      %245 = vector.extract_strided_slice %243 {offsets = [0, 0], sizes = [8, 32], strides = [1, 1]} : vector<8x128xf32> to vector<8x32xf32>
      %cst_77 = arith.constant 1.000000e+00 : f32
      %246 = vector.broadcast %cst_77 : f32 to vector<8x32xf32>
      %247 = arith.addf %245, %246 : vector<8x32xf32>
      %cst_78 = arith.constant 5.000000e-01 : f32
      %248 = vector.broadcast %cst_78 : f32 to vector<8x32xf32>
      %249 = arith.mulf %248, %247 : vector<8x32xf32>
      %250 = vector.extract_strided_slice %243 {offsets = [0, 32], sizes = [8, 32], strides = [1, 1]} : vector<8x128xf32> to vector<8x32xf32>
      %cst_79 = arith.constant 1.000000e+00 : f32
      %251 = vector.broadcast %cst_79 : f32 to vector<8x32xf32>
      %252 = arith.addf %250, %251 : vector<8x32xf32>
      %cst_80 = arith.constant 5.000000e-01 : f32
      %253 = vector.broadcast %cst_80 : f32 to vector<8x32xf32>
      %254 = arith.mulf %253, %252 : vector<8x32xf32>
      %255 = vector.extract_strided_slice %243 {offsets = [0, 96], sizes = [8, 32], strides = [1, 1]} : vector<8x128xf32> to vector<8x32xf32>
      %cst_81 = arith.constant 1.000000e+00 : f32
      %256 = vector.broadcast %cst_81 : f32 to vector<8x32xf32>
      %257 = arith.addf %255, %256 : vector<8x32xf32>
      %cst_82 = arith.constant 5.000000e-01 : f32
      %258 = vector.broadcast %cst_82 : f32 to vector<8x32xf32>
      %259 = arith.mulf %258, %257 : vector<8x32xf32>
      %260 = vector.extract_strided_slice %244 {offsets = [0, 64], sizes = [8, 32], strides = [1, 1]} : vector<8x128xf32> to vector<8x32xf32>
      %261 = arith.mulf %254, %232 : vector<8x32xf32>
      %262 = arith.mulf %249, %260 : vector<8x32xf32>
      %263 = arith.addf %261, %262 : vector<8x32xf32>
      %264 = math.tanh %263 : vector<8x32xf32>
      %265 = arith.mulf %259, %264 : vector<8x32xf32>
      %266 = arith.addi %0, %233 : i32
      %267 = vector.broadcast %266 : i32 to vector<8x1xi32>
      %268 = arith.cmpi slt, %267, %18 : vector<8x1xi32>
      %269 = vector.shape_cast %268 : vector<8x1xi1> to vector<8x1xi1>
      %270 = vector.broadcast %269 : vector<8x1xi1> to vector<8x32xi1>
      %271 = arith.select %270, %265, %229 : vector<8x32xi1>, vector<8x32xf32>
      %272 = vector.shape_cast %268 : vector<8x1xi1> to vector<8x1xi1>
      %273 = vector.broadcast %272 : vector<8x1xi1> to vector<8x32xi1>
      %274 = arith.select %273, %263, %232 : vector<8x32xi1>, vector<8x32xf32>
      %c6_i32 = arith.constant 6 : i32
      %275 = arith.addi %22, %c6_i32 : i32
      %c8_i32_83 = arith.constant 8 : i32
      %276 = arith.muli %275, %c8_i32_83 : i32
      %277 = tpu.assume_multiple %276, 8 : i32
      %278 = arith.index_cast %277 : i32 to index
      %c0_84 = arith.constant 0 : index
      %279 = vector.load %arg10[%278, %c0_84] : memref<64x128xf32, #tpu.memory_space<vmem>>, vector<8x128xf32>
      %280 = arith.truncf %271 : vector<8x32xf32> to vector<8x32xbf16>
      %cst_85 = arith.constant dense<0.000000e+00> : vector<8x128xf32>
      %281 = tpu.matmul %280, %19, %cst_85 {dimension_numbers = #tpu.dot_dimension_numbers<[1], [0], [0], [1], [0, 0, 1, 1], [], []>} : vector<8x32xbf16>, vector<32x128xbf16>, vector<8x128xf32> -> vector<8x128xf32>
      %282 = arith.addf %279, %281 : vector<8x128xf32>
      %cst_86 = arith.constant 5.000000e-01 : f32
      %283 = vector.broadcast %cst_86 : f32 to vector<8x128xf32>
      %284 = arith.mulf %283, %282 : vector<8x128xf32>
      %285 = math.tanh %284 : vector<8x128xf32>
      %286 = math.tanh %282 : vector<8x128xf32>
      %287 = vector.extract_strided_slice %285 {offsets = [0, 0], sizes = [8, 32], strides = [1, 1]} : vector<8x128xf32> to vector<8x32xf32>
      %cst_87 = arith.constant 1.000000e+00 : f32
      %288 = vector.broadcast %cst_87 : f32 to vector<8x32xf32>
      %289 = arith.addf %287, %288 : vector<8x32xf32>
      %cst_88 = arith.constant 5.000000e-01 : f32
      %290 = vector.broadcast %cst_88 : f32 to vector<8x32xf32>
      %291 = arith.mulf %290, %289 : vector<8x32xf32>
      %292 = vector.extract_strided_slice %285 {offsets = [0, 32], sizes = [8, 32], strides = [1, 1]} : vector<8x128xf32> to vector<8x32xf32>
      %cst_89 = arith.constant 1.000000e+00 : f32
      %293 = vector.broadcast %cst_89 : f32 to vector<8x32xf32>
      %294 = arith.addf %292, %293 : vector<8x32xf32>
      %cst_90 = arith.constant 5.000000e-01 : f32
      %295 = vector.broadcast %cst_90 : f32 to vector<8x32xf32>
      %296 = arith.mulf %295, %294 : vector<8x32xf32>
      %297 = vector.extract_strided_slice %285 {offsets = [0, 96], sizes = [8, 32], strides = [1, 1]} : vector<8x128xf32> to vector<8x32xf32>
      %cst_91 = arith.constant 1.000000e+00 : f32
      %298 = vector.broadcast %cst_91 : f32 to vector<8x32xf32>
      %299 = arith.addf %297, %298 : vector<8x32xf32>
      %cst_92 = arith.constant 5.000000e-01 : f32
      %300 = vector.broadcast %cst_92 : f32 to vector<8x32xf32>
      %301 = arith.mulf %300, %299 : vector<8x32xf32>
      %302 = vector.extract_strided_slice %286 {offsets = [0, 64], sizes = [8, 32], strides = [1, 1]} : vector<8x128xf32> to vector<8x32xf32>
      %303 = arith.mulf %296, %274 : vector<8x32xf32>
      %304 = arith.mulf %291, %302 : vector<8x32xf32>
      %305 = arith.addf %303, %304 : vector<8x32xf32>
      %306 = math.tanh %305 : vector<8x32xf32>
      %307 = arith.mulf %301, %306 : vector<8x32xf32>
      %308 = arith.addi %0, %275 : i32
      %309 = vector.broadcast %308 : i32 to vector<8x1xi32>
      %310 = arith.cmpi slt, %309, %18 : vector<8x1xi32>
      %311 = vector.shape_cast %310 : vector<8x1xi1> to vector<8x1xi1>
      %312 = vector.broadcast %311 : vector<8x1xi1> to vector<8x32xi1>
      %313 = arith.select %312, %307, %271 : vector<8x32xi1>, vector<8x32xf32>
      %314 = vector.shape_cast %310 : vector<8x1xi1> to vector<8x1xi1>
      %315 = vector.broadcast %314 : vector<8x1xi1> to vector<8x32xi1>
      %316 = arith.select %315, %305, %274 : vector<8x32xi1>, vector<8x32xf32>
      %c7_i32 = arith.constant 7 : i32
      %317 = arith.addi %22, %c7_i32 : i32
      %c8_i32_93 = arith.constant 8 : i32
      %318 = arith.muli %317, %c8_i32_93 : i32
      %319 = tpu.assume_multiple %318, 8 : i32
      %320 = arith.index_cast %319 : i32 to index
      %c0_94 = arith.constant 0 : index
      %321 = vector.load %arg10[%320, %c0_94] : memref<64x128xf32, #tpu.memory_space<vmem>>, vector<8x128xf32>
      %322 = arith.truncf %313 : vector<8x32xf32> to vector<8x32xbf16>
      %cst_95 = arith.constant dense<0.000000e+00> : vector<8x128xf32>
      %323 = tpu.matmul %322, %19, %cst_95 {dimension_numbers = #tpu.dot_dimension_numbers<[1], [0], [0], [1], [0, 0, 1, 1], [], []>} : vector<8x32xbf16>, vector<32x128xbf16>, vector<8x128xf32> -> vector<8x128xf32>
      %324 = arith.addf %321, %323 : vector<8x128xf32>
      %cst_96 = arith.constant 5.000000e-01 : f32
      %325 = vector.broadcast %cst_96 : f32 to vector<8x128xf32>
      %326 = arith.mulf %325, %324 : vector<8x128xf32>
      %327 = math.tanh %326 : vector<8x128xf32>
      %328 = math.tanh %324 : vector<8x128xf32>
      %329 = vector.extract_strided_slice %327 {offsets = [0, 0], sizes = [8, 32], strides = [1, 1]} : vector<8x128xf32> to vector<8x32xf32>
      %cst_97 = arith.constant 1.000000e+00 : f32
      %330 = vector.broadcast %cst_97 : f32 to vector<8x32xf32>
      %331 = arith.addf %329, %330 : vector<8x32xf32>
      %cst_98 = arith.constant 5.000000e-01 : f32
      %332 = vector.broadcast %cst_98 : f32 to vector<8x32xf32>
      %333 = arith.mulf %332, %331 : vector<8x32xf32>
      %334 = vector.extract_strided_slice %327 {offsets = [0, 32], sizes = [8, 32], strides = [1, 1]} : vector<8x128xf32> to vector<8x32xf32>
      %cst_99 = arith.constant 1.000000e+00 : f32
      %335 = vector.broadcast %cst_99 : f32 to vector<8x32xf32>
      %336 = arith.addf %334, %335 : vector<8x32xf32>
      %cst_100 = arith.constant 5.000000e-01 : f32
      %337 = vector.broadcast %cst_100 : f32 to vector<8x32xf32>
      %338 = arith.mulf %337, %336 : vector<8x32xf32>
      %339 = vector.extract_strided_slice %327 {offsets = [0, 96], sizes = [8, 32], strides = [1, 1]} : vector<8x128xf32> to vector<8x32xf32>
      %cst_101 = arith.constant 1.000000e+00 : f32
      %340 = vector.broadcast %cst_101 : f32 to vector<8x32xf32>
      %341 = arith.addf %339, %340 : vector<8x32xf32>
      %cst_102 = arith.constant 5.000000e-01 : f32
      %342 = vector.broadcast %cst_102 : f32 to vector<8x32xf32>
      %343 = arith.mulf %342, %341 : vector<8x32xf32>
      %344 = vector.extract_strided_slice %328 {offsets = [0, 64], sizes = [8, 32], strides = [1, 1]} : vector<8x128xf32> to vector<8x32xf32>
      %345 = arith.mulf %338, %316 : vector<8x32xf32>
      %346 = arith.mulf %333, %344 : vector<8x32xf32>
      %347 = arith.addf %345, %346 : vector<8x32xf32>
      %348 = math.tanh %347 : vector<8x32xf32>
      %349 = arith.mulf %343, %348 : vector<8x32xf32>
      %350 = arith.addi %0, %317 : i32
      %351 = vector.broadcast %350 : i32 to vector<8x1xi32>
      %352 = arith.cmpi slt, %351, %18 : vector<8x1xi32>
      %353 = vector.shape_cast %352 : vector<8x1xi1> to vector<8x1xi1>
      %354 = vector.broadcast %353 : vector<8x1xi1> to vector<8x32xi1>
      %355 = arith.select %354, %349, %313 : vector<8x32xi1>, vector<8x32xf32>
      %356 = vector.shape_cast %352 : vector<8x1xi1> to vector<8x1xi1>
      %357 = vector.broadcast %356 : vector<8x1xi1> to vector<8x32xi1>
      %358 = arith.select %357, %347, %316 : vector<8x32xi1>, vector<8x32xf32>
      %c1_i32_103 = arith.constant 1 : i32
      %c0_104 = arith.constant 0 : index
      %c0_105 = arith.constant 0 : index
      %359 = vector.load %arg11[%c0_104, %c0_105] : memref<8x32xf32, #tpu.memory_space<vmem>>, vector<8x32xf32>
      tpu.vector_store %arg11[%c0_104, %c0_105], %355 {strides = array<i32>} : memref<8x32xf32, #tpu.memory_space<vmem>>, vector<8x32xf32>,
      %c0_106 = arith.constant 0 : index
      %c0_107 = arith.constant 0 : index
      %360 = vector.load %arg12[%c0_106, %c0_107] : memref<8x32xf32, #tpu.memory_space<vmem>>, vector<8x32xf32>
      tpu.vector_store %arg12[%c0_106, %c0_107], %358 {strides = array<i32>} : memref<8x32xf32, #tpu.memory_space<vmem>>, vector<8x32xf32>,
    } else {
    }
    %c0_i32_2 = arith.constant 0 : i32
    %8 = arith.cmpi eq, %arg0, %c0_i32_2 : i32
    %9 = arith.extui %8 : i1 to i32
    %c0_i32_3 = arith.constant 0 : i32
    %10 = arith.cmpi ne, %9, %c0_i32_3 : i32
    scf.if %10 {
      %c0_4 = arith.constant 0 : index
      %c0_5 = arith.constant 0 : index
      %11 = vector.load %arg11[%c0_4, %c0_5] : memref<8x32xf32, #tpu.memory_space<vmem>>, vector<8x32xf32>
      %12 = arith.truncf %11 : vector<8x32xf32> to vector<8x32xbf16>
      %c0_6 = arith.constant 0 : index
      %c0_7 = arith.constant 0 : index
      %13 = vector.load %arg7[%c0_6, %c0_7] : memref<32x128xbf16, #tpu.memory_space<vmem>>, vector<32x128xbf16>
      %cst = arith.constant dense<0.000000e+00> : vector<8x128xf32>
      %14 = tpu.matmul %12, %13, %cst {dimension_numbers = #tpu.dot_dimension_numbers<[1], [0], [0], [1], [0, 0, 1, 1], [], []>} : vector<8x32xbf16>, vector<32x128xbf16>, vector<8x128xf32> -> vector<8x128xf32>
      %c0_8 = arith.constant 0 : index
      %c0_9 = arith.constant 0 : index
      %15 = vector.load %arg8[%c0_8, %c0_9] : memref<1x128xf32, #tpu.memory_space<vmem>>, vector<1x128xf32>
      %16 = vector.broadcast %15 : vector<1x128xf32> to vector<8x128xf32>
      %17 = arith.addf %14, %16 : vector<8x128xf32>
      %c0_10 = arith.constant 0 : index
      %c0_11 = arith.constant 0 : index
      %18 = vector.load %arg9[%c0_10, %c0_11] : memref<8x128xf32, #tpu.memory_space<vmem>>, vector<8x128xf32>
      tpu.vector_store %arg9[%c0_10, %c0_11], %17 {strides = array<i32>} : memref<8x128xf32, #tpu.memory_space<vmem>>, vector<8x128xf32>,
    } else {
    }
    return
  }
  func.func @transform_0(%arg0: i32, %arg1: memref<1xi32, #tpu.memory_space<smem>>) -> (i32, i32) {
    %c0_i32 = arith.constant 0 : i32
    %c0_i32_0 = arith.constant 0 : i32
    return %arg0, %c0_i32 : i32, i32
  }
  func.func @transform_1(%arg0: i32, %arg1: memref<1xi32, #tpu.memory_space<smem>>) -> (i32, i32) {
    %c0_i32 = arith.constant 0 : i32
    %c0_i32_0 = arith.constant 0 : i32
    %c0_i32_1 = arith.constant 0 : i32
    return %c0_i32, %c0_i32_0 : i32, i32
  }
  func.func @transform_2(%arg0: i32, %arg1: memref<1xi32, #tpu.memory_space<smem>>) -> (i32, i32) {
    %c0_i32 = arith.constant 0 : i32
    %c0_i32_0 = arith.constant 0 : i32
    %c0_i32_1 = arith.constant 0 : i32
    return %c0_i32, %c0_i32_0 : i32, i32
  }
  func.func @transform_3(%arg0: i32, %arg1: memref<1xi32, #tpu.memory_space<smem>>) -> (i32, i32) {
    %c0_i32 = arith.constant 0 : i32
    %c0_i32_0 = arith.constant 0 : i32
    %c0_i32_1 = arith.constant 0 : i32
    return %c0_i32, %c0_i32_0 : i32, i32
  }
  func.func @transform_4(%arg0: i32, %arg1: memref<1xi32, #tpu.memory_space<smem>>) -> (i32, i32) {
    %c0_i32 = arith.constant 0 : i32
    %c0_i32_0 = arith.constant 0 : i32
    %c0_i32_1 = arith.constant 0 : i32
    return %c0_i32, %c0_i32_0 : i32, i32
  }
  func.func @transform_5(%arg0: i32, %arg1: memref<1xi32, #tpu.memory_space<smem>>) -> (i32, i32) {
    %c0_i32 = arith.constant 0 : i32
    %c0_i32_0 = arith.constant 0 : i32
    %c0_i32_1 = arith.constant 0 : i32
    return %c0_i32, %c0_i32_0 : i32, i32
  }
  func.func @transform_6(%arg0: i32, %arg1: memref<1xi32, #tpu.memory_space<smem>>) -> (i32, i32) {
    %c0_i32 = arith.constant 0 : i32
    %c0_i32_0 = arith.constant 0 : i32
    %c0_i32_1 = arith.constant 0 : i32
    return %c0_i32, %c0_i32_0 : i32, i32
  }
  func.func @transform_7(%arg0: i32, %arg1: memref<1xi32, #tpu.memory_space<smem>>) -> (i32, i32) {
    %c0_i32 = arith.constant 0 : i32
    %c0_i32_0 = arith.constant 0 : i32
    %c0_i32_1 = arith.constant 0 : i32
    return %c0_i32, %c0_i32_0 : i32, i32
  }
}

</mosaic_0001>

<llo_original>
// kernel: tpu_custom_call.1
$region0: #{tpu_custom_call.1}
  #allocation0 [shape = 'u32[]', space=smem, size = 0x4, offset = 0x4, fixed_abs, tag = 'smem constant byte address 0x4 - core index']
  #allocation1 [shape = 'u32[144,128]{1,0:T(1,128)}', space=vmem, size = 0x12000, scoped, tag = 'internal scratch']
  #allocation2 [shape = 'f32[64,128]{1,0:T(8,128)}', space=vmem, size = 0x8000, scoped, tag = 'scratch operand']
  #allocation3 [shape = 'f32[8,32]{1,0:T(8,128)}', space=vmem, size = 0x1000, scoped, tag = 'scratch operand']
  #allocation4 [shape = 'f32[8,32]{1,0:T(8,128)}', space=vmem, size = 0x1000, scoped, tag = 'scratch operand']
  #allocation5 [shape = 's32[1]{0}', space=sflag, size = 0x4, scoped, tag = 'scoped memory for tpu_custom_call.1']
  #allocation6 [shape = 's32[1]{0:T(128)S(6)}', space=smem, size = 0x200, scoped, tag = 'prefetched SMEM operand 0']
  %s0 = inlined_call_operand.<no memory space> [shape: s32[1], index: 0, kind: input, shape index: {}]
  %s1 = inlined_call_operand.vmem [shape: bf16[64,16], index: 1, kind: input, shape index: {}]
  %s2 = inlined_call_operand.vmem [shape: s32[8,1], index: 2, kind: input, shape index: {}]
  %s3 = inlined_call_operand.vmem [shape: bf16[16,128], index: 3, kind: input, shape index: {}]
  %s4 = inlined_call_operand.vmem [shape: bf16[32,128], index: 4, kind: input, shape index: {}]
  %s5 = inlined_call_operand.vmem [shape: f32[1,128], index: 5, kind: input, shape index: {}]
  %s6 = inlined_call_operand.vmem [shape: bf16[32,128], index: 6, kind: input, shape index: {}]
  %s7 = inlined_call_operand.vmem [shape: f32[1,128], index: 7, kind: input, shape index: {}]
  %s8 = inlined_call_operand.hbm [shape: f32[8,128], index: 8, kind: output, shape index: {}]
  %s9 = sld [smem:[#allocation0]]
  $region50: #{tpu_custom_call.1} parent=0
    _
  %s11 = ssub.s32 1, %s9
  %s12 = scalar_select 0, %s11, %s9
  %13 = sst [smem:[#allocation6]] %s0
  $region1: #{tpu_custom_call.1} parent=0
    #allocation7 [shape = 'u8[4096]{0}', space=vmem, size = 0x1000, scoped, tag = 'output window, operand 0, single buffered']
    #allocation8 [shape = 's32[1]{0}', space=sflag, size = 0x4, scoped, tag = 'scoped memory for tpu_custom_call.1']
    %14 = vsyncpa [#allocation8], 0
    // Predicated region
    $region2: #{tpu_custom_call.1} parent=1 // pred_check
      _
    $region3: #{tpu_custom_call.1} parent=1 // pred_check_branch
      %16 = sbr.rel (0) target = $region5
    $region4: #{tpu_custom_call.1} parent=1 // pred_region
      _
    $region5: #{tpu_custom_call.1} parent=1 // pred_fallthru
      _
    // Predicated region
    $region6: #{tpu_custom_call.1} parent=1 // pred_check
      _
    $region7: #{tpu_custom_call.1} parent=1 // pred_check_branch
      %18 = sbr.rel (0) target = $region9
    $region8: #{tpu_custom_call.1} parent=1 // pred_region
      _
    $region9: #{tpu_custom_call.1} parent=1 // pred_fallthru
      _
    // Predicated region
    $region10: #{tpu_custom_call.1} parent=1 // pred_check
      _
    $region11: #{tpu_custom_call.1} parent=1 // pred_check_branch
      %20 = sbr.rel (0) target = $region13
    $region12: #{tpu_custom_call.1} parent=1 // pred_region
      _
    $region13: #{tpu_custom_call.1} parent=1 // pred_fallthru
      _
    // Predicated region
    $region14: #{tpu_custom_call.1} parent=1 // pred_check
      _
    $region15: #{tpu_custom_call.1} parent=1 // pred_check_branch
      %22 = sbr.rel (0) target = $region17
    $region16: #{tpu_custom_call.1} parent=1 // pred_region
      _
    $region17: #{tpu_custom_call.1} parent=1 // pred_fallthru
      _
    // Predicated region
    $region18: #{tpu_custom_call.1} parent=1 // pred_check
      _
    $region19: #{tpu_custom_call.1} parent=1 // pred_check_branch
      %24 = sbr.rel (0) target = $region21
    $region20: #{tpu_custom_call.1} parent=1 // pred_region
      _
    $region21: #{tpu_custom_call.1} parent=1 // pred_fallthru
      _
    // Predicated region
    $region22: #{tpu_custom_call.1} parent=1 // pred_check
      _
    $region23: #{tpu_custom_call.1} parent=1 // pred_check_branch
      %26 = sbr.rel (0) target = $region25
    $region24: #{tpu_custom_call.1} parent=1 // pred_region
      _
    $region25: #{tpu_custom_call.1} parent=1 // pred_fallthru
      _
    // Predicated region
    $region26: #{tpu_custom_call.1} parent=1 // pred_check
      _
    $region27: #{tpu_custom_call.1} parent=1 // pred_check_branch
      %28 = sbr.rel (0) target = $region29
    $region28: #{tpu_custom_call.1} parent=1 // pred_region
      _
    $region29: #{tpu_custom_call.1} parent=1 // pred_fallthru
      _
    %s30 = smul.u32 0, 8
    %s31 = sld [smem:[#allocation6]]
    %p32 = scmp.eq.s32.totalorder 0, 0
    // Predicated region
    $region30: #{tpu_custom_call.1} parent=1 // pred_check
      %p33 = pneg %p32
    $region31: #{tpu_custom_call.1} parent=1 // pred_check_branch
      %35 = sbr.rel (%p33) target = $region33
    $region32: #{tpu_custom_call.1} parent=1 // pred_region
      %vm36 = vcmask 261120
      %37 = vst.msk [vmem:[#allocation3] sm:$0xff] %vm36, 0.0
      %38 = vst.msk [vmem:[#allocation4] sm:$0xff] %vm36, 0.0
    $region33: #{tpu_custom_call.1} parent=1 // pred_fallthru
      _
    %p39 = scmp.lt.s32.totalorder %s30, %s31
    // Predicated region
    $region34: #{tpu_custom_call.1} parent=1 // pred_check
      %p40 = pneg %p39
    $region35: #{tpu_custom_call.1} parent=1 // pred_check_branch
      %42 = sbr.rel (%p40) target = $region37
    $region36: #{tpu_custom_call.1} parent=1 // pred_region
      %v43 = vld [vmem:[%s1] sm:$0xf]
      %v44 = vld [vmem:[%s1 + $0x4] sm:$0xf]
      %v45 = vld [vmem:[%s1 + $0x8] sm:$0xf]
      %v46 = vld [vmem:[%s1 + $0xc] sm:$0xf]
      %v47 = vld [vmem:[%s1 + $0x10] sm:$0xf]
      %v48 = vld [vmem:[%s1 + $0x14] sm:$0xf]
      %v49 = vld [vmem:[%s1 + $0x18] sm:$0xf]
      %v50 = vld [vmem:[%s1 + $0x1c] sm:$0xf]
      %v51 = vld [vmem:[%s3] sm:$0xf]
      %v52 = vld [vmem:[%s3 + $0x4] sm:$0xf]
      %v53 = vld [vmem:[%s5] sm:$0x1]
      %v55 = vlaneseq
      %v56 = vshrl.u32 %v55, 7
      %v57 = vsub.s32 0, %v56
      %v58 = vrot.slane %v53, %v57
      %v68 = vunpack.c.l.b16 %v43
      %v69 = vunpack.c.l.b16 %v44
      %v70 = vunpack.c.l.b16 %v45
      %v71 = vunpack.c.l.b16 %v46
      %v72 = vunpack.c.l.b16 %v47
      %v73 = vunpack.c.l.b16 %v48
      %v74 = vunpack.c.l.b16 %v49
      %v75 = vunpack.c.l.b16 %v50
      %v76 = vpack.c.b16 %v69, %v68
      %v77 = vpack.c.b16 %v71, %v70
      %v78 = vpack.c.b16 %v73, %v72
      %v79 = vpack.c.b16 %v75, %v74
      %v82 = vunpack.c.l.b16 %v51
      %v83 = vunpack.c.l.b16 %v52
      %v84 = vpack.c.b16 %v83, %v82
      %vm86 = vcmask 130048
      %v88 = vsel %vm86, %v76, 0
      %v91 = vsel %vm86, %v77, 0
      %v94 = vsel %vm86, %v78, 0
      %v97 = vsel %vm86, %v79, 0
      %99 = vmatprep.subr.bf16.mxu0 0
      %100 = vmatpush1.bf16.msra.mxu0 %v84
      %101 = vmatprep.subr.bf16.mxu0 0
      %102 = vmatpush1.bf16.msra.mxu0 0
      %103 = vmatprep.subr.bf16.mxu0 0
      %104 = vmatpush1.bf16.msra.mxu0 0
      %105 = vmatprep.subr.bf16.mxu0 0
      %106 = vmatpush1.bf16.msra.mxu0 0
      %107 = vmatprep.subr.bf16.mxu0 0
      %108 = vmatpush1.bf16.msra.mxu0 0
      %109 = vmatprep.subr.bf16.mxu0 0
      %110 = vmatpush1.bf16.msra.mxu0 0
      %111 = vmatprep.subr.bf16.mxu0 0
      %112 = vmatpush1.bf16.msra.mxu0 0
      %113 = vmatprep.subr.bf16.mxu0 0
      %114 = vmatpush1.bf16.msra.mxu0 0
      %115 = vmatprep.subr.bf16.mxu0 0
      %116 = vmatpush1.bf16.msra.mxu0 0
      %117 = vmatprep.subr.bf16.mxu0 0
      %118 = vmatpush1.bf16.msra.mxu0 0
      %119 = vmatprep.subr.bf16.mxu0 0
      %120 = vmatpush1.bf16.msra.mxu0 0
      %121 = vmatprep.subr.bf16.mxu0 0
      %122 = vmatpush1.bf16.msra.mxu0 0
      %123 = vmatprep.subr.bf16.mxu0 0
      %124 = vmatpush1.bf16.msra.mxu0 0
      %125 = vmatprep.subr.bf16.mxu0 0
      %126 = vmatpush1.bf16.msra.mxu0 0
      %127 = vmatprep.subr.bf16.mxu0 0
      %128 = vmatpush1.bf16.msra.mxu0 0
      %129 = vmatprep.subr.bf16.mxu0 0
      %130 = vmatpush1.bf16.msra.mxu0 0
      %131 = vmatprep.mubr.bf16.mxu0 0
      %132 = vmatmul.mubr.bf16.gmra.mrb[0].mxu0 %v88
      %v133 = vpop.f32.mrb[0].mxu0
      %v134 = vadd.f32 %v58, %v133
      %v135 = vpop.f32.mrb[0].mxu0
      %v136 = vpop.f32.mrb[0].mxu0
      %v137 = vadd.f32 %v58, %v136
      %v138 = vpop.f32.mrb[0].mxu0
      %139 = vmatprep.mubr.bf16.mxu0 0
      %140 = vmatmul.mubr.bf16.gmra.mrb[0].mxu0 %v91
      %v141 = vpop.f32.mrb[0].mxu0
      %v142 = vadd.f32 %v58, %v141
      %v143 = vpop.f32.mrb[0].mxu0
      %v144 = vpop.f32.mrb[0].mxu0
      %v145 = vadd.f32 %v58, %v144
      %v146 = vpop.f32.mrb[0].mxu0
      %147 = vmatprep.mubr.bf16.mxu0 0
      %148 = vmatmul.mubr.bf16.gmra.mrb[0].mxu0 %v94
      %v149 = vpop.f32.mrb[0].mxu0
      %v150 = vadd.f32 %v58, %v149
      %v151 = vpop.f32.mrb[0].mxu0
      %v152 = vpop.f32.mrb[0].mxu0
      %v153 = vadd.f32 %v58, %v152
      %v154 = vpop.f32.mrb[0].mxu0
      %155 = vmatprep.mubr.bf16.mxu0 0
      %156 = vmatmul.mubr.bf16.gmra.mrb[0].mxu0 %v97
      %v157 = vpop.f32.mrb[0].mxu0
      %v158 = vadd.f32 %v58, %v157
      %v159 = vpop.f32.mrb[0].mxu0
      %v160 = vpop.f32.mrb[0].mxu0
      %v161 = vadd.f32 %v58, %v160
      %v162 = vpop.f32.mrb[0].mxu0
      %163 = vdwg.mxu0
      %164 = vst [vmem:[#allocation2] sm:$0xff] %v134
      %165 = vst [vmem:[#allocation2 + $0x8] sm:$0xff] %v137
      %166 = vst [vmem:[#allocation2 + $0x10] sm:$0xff] %v142
      %167 = vst [vmem:[#allocation2 + $0x18] sm:$0xff] %v145
      %168 = vst [vmem:[#allocation2 + $0x20] sm:$0xff] %v150
      %169 = vst [vmem:[#allocation2 + $0x28] sm:$0xff] %v153
      %170 = vst [vmem:[#allocation2 + $0x30] sm:$0xff] %v158
      %171 = vst [vmem:[#allocation2 + $0x38] sm:$0xff] %v161
      %v172 = vld [vmem:[%s2] sm:$0xff]
      %v173 = vld [vmem:[%s4] sm:$0xf]
      %v174 = vld [vmem:[%s4 + $0x4] sm:$0xf]
      %v175 = vld [vmem:[%s4 + $0x8] sm:$0xf]
      %v176 = vld [vmem:[%s4 + $0xc] sm:$0xf]
      %v177 = vld [vmem:[#allocation3] sm:$0xff]
      %v178 = vld [vmem:[#allocation4] sm:$0xff]
      %v179 = vld [vmem:[#allocation2] sm:$0xff]
      %v180 = vpack.c.bf16 %v177, %v177
      %v185 = vunpack.c.l.b16 %v173
      %v186 = vunpack.c.l.b16 %v174
      %v187 = vunpack.c.l.b16 %v175
      %v188 = vunpack.c.l.b16 %v176
      %v189 = vpack.c.b16 %v186, %v185
      %v190 = vpack.c.b16 %v188, %v187
      %vm193 = vcmask 261120
      %v195 = vsel %vm193, %v180, 0
      %197 = vmatprep.subr.bf16.mxu0 0
      %198 = vmatpush1.bf16.msra.mxu0 %v189
      %199 = vmatprep.subr.bf16.mxu0 0
      %200 = vmatpush1.bf16.msra.mxu0 %v190
      %201 = vmatprep.subr.bf16.mxu0 0
      %202 = vmatpush1.bf16.msra.mxu0 0
      %203 = vmatprep.subr.bf16.mxu0 0
      %204 = vmatpush1.bf16.msra.mxu0 0
      %205 = vmatprep.subr.bf16.mxu0 0
      %206 = vmatpush1.bf16.msra.mxu0 0
      %207 = vmatprep.subr.bf16.mxu0 0
      %208 = vmatpush1.bf16.msra.mxu0 0
      %209 = vmatprep.subr.bf16.mxu0 0
      %210 = vmatpush1.bf16.msra.mxu0 0
      %211 = vmatprep.subr.bf16.mxu0 0
      %212 = vmatpush1.bf16.msra.mxu0 0
      %213 = vmatprep.subr.bf16.mxu0 0
      %214 = vmatpush1.bf16.msra.mxu0 0
      %215 = vmatprep.subr.bf16.mxu0 0
      %216 = vmatpush1.bf16.msra.mxu0 0
      %217 = vmatprep.subr.bf16.mxu0 0
      %218 = vmatpush1.bf16.msra.mxu0 0
      %219 = vmatprep.subr.bf16.mxu0 0
      %220 = vmatpush1.bf16.msra.mxu0 0
      %221 = vmatprep.subr.bf16.mxu0 0
      %222 = vmatpush1.bf16.msra.mxu0 0
      %223 = vmatprep.subr.bf16.mxu0 0
      %224 = vmatpush1.bf16.msra.mxu0 0
      %225 = vmatprep.subr.bf16.mxu0 0
      %226 = vmatpush1.bf16.msra.mxu0 0
      %227 = vmatprep.subr.bf16.mxu0 0
      %228 = vmatpush1.bf16.msra.mxu0 0
      %229 = vmatprep.mubr.bf16.mxu0 0
      %230 = vmatmul.mubr.bf16.gmra.mrb[0].mxu0 %v195
      %v231 = vpop.f32.mrb[0].mxu0
      %v232 = vadd.f32 0.0, %v231
      %v233 = vpop.f32.mrb[0].mxu0
      %v234 = vpop.f32.mrb[0].mxu0
      %v235 = vpop.f32.mrb[0].mxu0
      %236 = vdwg.mxu0
      %v237 = vadd.f32 %v179, %v232
      %v238 = vmul.f32 %v237, 0.5
      %v239 = vtanh.pop %v238
      %v240 = vtanh.pop %v237
      %v241 = vadd.f32 %v239, 1.0
      %v242 = vmul.f32 %v241, 0.5
      %244 = vrot.lane.b32.xlu0 %v178, 32
      %v245 = vpop.permute.xlu0 %244
      %v247 = vmul.f32 %v242, %v245
      %249 = vrot.lane.b32.xlu0 %v240, 64
      %v250 = vpop.permute.xlu0 %249
      %v252 = vmul.f32 %v242, %v250
      %254 = vrot.lane.b32.xlu0 %v252, 32
      %v255 = vpop.permute.xlu0 %254
      %v257 = vadd.f32 %v247, %v255
      %v258 = vtanh.pop %v257
      %260 = vrot.lane.b32.xlu0 %v258, 64
      %v261 = vpop.permute.xlu0 %260
      %v263 = vmul.f32 %v242, %v261
      %v264 = vstv %s30
      %vm265 = vcmp.lt.s32.totalorder %v264, %v172
      %v266 = vsel %vm265, 1, 0
      %267 = vset.pattern.permute.xlu0 0
      %268 = vperm.xlu0 %267, %v266
      %v269 = vpop.permute.xlu0 %268
      %vm270 = vcmp.eq.s32.totalorder %v269, 1
      %272 = vrot.lane.b32.xlu0 %v177, 96
      %v273 = vpop.permute.xlu0 %272
      %v275 = vsel %vm270, %v263, %v273
      %v276 = vsel %vm270, %v257, %v245
      %s277 = scalar_lea.vmem [#allocation2], 8
      %v278 = vld [vmem:[%s277] sm:$0xff]
      %v279 = vpack.c.bf16 %v275, %v275
      %281 = vrot.lane.b32.xlu0 %v279, 32
      %v282 = vpop.permute.xlu0 %281
      %v284 = vsel %vm193, %v282, 0
      %286 = vmatprep.subr.bf16.mxu0 0
      %287 = vmatpush1.bf16.msra.mxu0 %v189
      %288 = vmatprep.subr.bf16.mxu0 0
      %289 = vmatpush1.bf16.msra.mxu0 %v190
      %290 = vmatprep.subr.bf16.mxu0 0
      %291 = vmatpush1.bf16.msra.mxu0 0
      %292 = vmatprep.subr.bf16.mxu0 0
      %293 = vmatpush1.bf16.msra.mxu0 0
      %294 = vmatprep.subr.bf16.mxu0 0
      %295 = vmatpush1.bf16.msra.mxu0 0
      %296 = vmatprep.subr.bf16.mxu0 0
      %297 = vmatpush1.bf16.msra.mxu0 0
      %298 = vmatprep.subr.bf16.mxu0 0
      %299 = vmatpush1.bf16.msra.mxu0 0
      %300 = vmatprep.subr.bf16.mxu0 0
      %301 = vmatpush1.bf16.msra.mxu0 0
      %302 = vmatprep.subr.bf16.mxu0 0
      %303 = vmatpush1.bf16.msra.mxu0 0
      %304 = vmatprep.subr.bf16.mxu0 0
      %305 = vmatpush1.bf16.msra.mxu0 0
      %306 = vmatprep.subr.bf16.mxu0 0
      %307 = vmatpush1.bf16.msra.mxu0 0
      %308 = vmatprep.subr.bf16.mxu0 0
      %309 = vmatpush1.bf16.msra.mxu0 0
      %310 = vmatprep.subr.bf16.mxu0 0
      %311 = vmatpush1.bf16.msra.mxu0 0
      %312 = vmatprep.subr.bf16.mxu0 0
      %313 = vmatpush1.bf16.msra.mxu0 0
      %314 = vmatprep.subr.bf16.mxu0 0
      %315 = vmatpush1.bf16.msra.mxu0 0
      %316 = vmatprep.subr.bf16.mxu0 0
      %317 = vmatpush1.bf16.msra.mxu0 0
      %318 = vmatprep.mubr.bf16.mxu0 0
      %319 = vmatmul.mubr.bf16.gmra.mrb[0].mxu0 %v284
      %v320 = vpop.f32.mrb[0].mxu0
      %v321 = vadd.f32 0.0, %v320
      %v322 = vpop.f32.mrb[0].mxu0
      %v323 = vpop.f32.mrb[0].mxu0
      %v324 = vpop.f32.mrb[0].mxu0
      %325 = vdwg.mxu0
      %v326 = vadd.f32 %v278, %v321
      %v327 = vmul.f32 %v326, 0.5
      %v328 = vtanh.pop %v327
      %v329 = vtanh.pop %v326
      %v330 = vadd.f32 %v328, 1.0
      %v331 = vmul.f32 %v330, 0.5
      %v332 = vmul.f32 %v331, %v276
      %334 = vrot.lane.b32.xlu0 %v329, 64
      %v335 = vpop.permute.xlu0 %334
      %v337 = vmul.f32 %v331, %v335
      %339 = vrot.lane.b32.xlu0 %v337, 32
      %v340 = vpop.permute.xlu0 %339
      %v342 = vadd.f32 %v332, %v340
      %v343 = vtanh.pop %v342
      %345 = vrot.lane.b32.xlu0 %v343, 64
      %v346 = vpop.permute.xlu0 %345
      %v348 = vmul.f32 %v331, %v346
      %s349 = sadd.s32 %s30, 1
      %v350 = vstv %s349
      %vm351 = vcmp.lt.s32.totalorder %v350, %v172
      %v352 = vsel %vm351, 1, 0
      %353 = vset.pattern.permute.xlu0 0
      %354 = vperm.xlu0 %353, %v352
      %v355 = vpop.permute.xlu0 %354
      %vm356 = vcmp.eq.s32.totalorder %v355, 1
      %v357 = vsel %vm356, %v348, %v275
      %v358 = vsel %vm356, %v342, %v276
      %s359 = scalar_lea.vmem [#allocation2], 16
      %v360 = vld [vmem:[%s359] sm:$0xff]
      %v361 = vpack.c.bf16 %v357, %v357
      %363 = vrot.lane.b32.xlu0 %v361, 32
      %v364 = vpop.permute.xlu0 %363
      %v366 = vsel %vm193, %v364, 0
      %368 = vmatprep.subr.bf16.mxu0 0
      %369 = vmatpush1.bf16.msra.mxu0 %v189
      %370 = vmatprep.subr.bf16.mxu0 0
      %371 = vmatpush1.bf16.msra.mxu0 %v190
      %372 = vmatprep.subr.bf16.mxu0 0
      %373 = vmatpush1.bf16.msra.mxu0 0
      %374 = vmatprep.subr.bf16.mxu0 0
      %375 = vmatpush1.bf16.msra.mxu0 0
      %376 = vmatprep.subr.bf16.mxu0 0
      %377 = vmatpush1.bf16.msra.mxu0 0
      %378 = vmatprep.subr.bf16.mxu0 0
      %379 = vmatpush1.bf16.msra.mxu0 0
      %380 = vmatprep.subr.bf16.mxu0 0
      %381 = vmatpush1.bf16.msra.mxu0 0
      %382 = vmatprep.subr.bf16.mxu0 0
      %383 = vmatpush1.bf16.msra.mxu0 0
      %384 = vmatprep.subr.bf16.mxu0 0
      %385 = vmatpush1.bf16.msra.mxu0 0
      %386 = vmatprep.subr.bf16.mxu0 0
      %387 = vmatpush1.bf16.msra.mxu0 0
      %388 = vmatprep.subr.bf16.mxu0 0
      %389 = vmatpush1.bf16.msra.mxu0 0
      %390 = vmatprep.subr.bf16.mxu0 0
      %391 = vmatpush1.bf16.msra.mxu0 0
      %392 = vmatprep.subr.bf16.mxu0 0
      %393 = vmatpush1.bf16.msra.mxu0 0
      %394 = vmatprep.subr.bf16.mxu0 0
      %395 = vmatpush1.bf16.msra.mxu0 0
      %396 = vmatprep.subr.bf16.mxu0 0
      %397 = vmatpush1.bf16.msra.mxu0 0
      %398 = vmatprep.subr.bf16.mxu0 0
      %399 = vmatpush1.bf16.msra.mxu0 0
      %400 = vmatprep.mubr.bf16.mxu0 0
      %401 = vmatmul.mubr.bf16.gmra.mrb[0].mxu0 %v366
      %v402 = vpop.f32.mrb[0].mxu0
      %v403 = vadd.f32 0.0, %v402
      %v404 = vpop.f32.mrb[0].mxu0
      %v405 = vpop.f32.mrb[0].mxu0
      %v406 = vpop.f32.mrb[0].mxu0
      %407 = vdwg.mxu0
      %v408 = vadd.f32 %v360, %v403
      %v409 = vmul.f32 %v408, 0.5
      %v410 = vtanh.pop %v409
      %v411 = vtanh.pop %v408
      %v412 = vadd.f32 %v410, 1.0
      %v413 = vmul.f32 %v412, 0.5
      %v414 = vmul.f32 %v413, %v358
      %416 = vrot.lane.b32.xlu0 %v411, 64
      %v417 = vpop.permute.xlu0 %416
      %v419 = vmul.f32 %v413, %v417
      %421 = vrot.lane.b32.xlu0 %v419, 32
      %v422 = vpop.permute.xlu0 %421
      %v424 = vadd.f32 %v414, %v422
      %v425 = vtanh.pop %v424
      %427 = vrot.lane.b32.xlu0 %v425, 64
      %v428 = vpop.permute.xlu0 %427
      %v430 = vmul.f32 %v413, %v428
      %s431 = sadd.s32 %s30, 2
      %v432 = vstv %s431
      %vm433 = vcmp.lt.s32.totalorder %v432, %v172
      %v434 = vsel %vm433, 1, 0
      %435 = vset.pattern.permute.xlu0 0
      %436 = vperm.xlu0 %435, %v434
      %v437 = vpop.permute.xlu0 %436
      %vm438 = vcmp.eq.s32.totalorder %v437, 1
      %v439 = vsel %vm438, %v430, %v357
      %v440 = vsel %vm438, %v424, %v358
      %s441 = scalar_lea.vmem [#allocation2], 24
      %v442 = vld [vmem:[%s441] sm:$0xff]
      %v443 = vpack.c.bf16 %v439, %v439
      %445 = vrot.lane.b32.xlu0 %v443, 32
      %v446 = vpop.permute.xlu0 %445
      %v448 = vsel %vm193, %v446, 0
      %450 = vmatprep.subr.bf16.mxu0 0
      %451 = vmatpush1.bf16.msra.mxu0 %v189
      %452 = vmatprep.subr.bf16.mxu0 0
      %453 = vmatpush1.bf16.msra.mxu0 %v190
      %454 = vmatprep.subr.bf16.mxu0 0
      %455 = vmatpush1.bf16.msra.mxu0 0
      %456 = vmatprep.subr.bf16.mxu0 0
      %457 = vmatpush1.bf16.msra.mxu0 0
      %458 = vmatprep.subr.bf16.mxu0 0
      %459 = vmatpush1.bf16.msra.mxu0 0
      %460 = vmatprep.subr.bf16.mxu0 0
      %461 = vmatpush1.bf16.msra.mxu0 0
      %462 = vmatprep.subr.bf16.mxu0 0
      %463 = vmatpush1.bf16.msra.mxu0 0
      %464 = vmatprep.subr.bf16.mxu0 0
      %465 = vmatpush1.bf16.msra.mxu0 0
      %466 = vmatprep.subr.bf16.mxu0 0
      %467 = vmatpush1.bf16.msra.mxu0 0
      %468 = vmatprep.subr.bf16.mxu0 0
      %469 = vmatpush1.bf16.msra.mxu0 0
      %470 = vmatprep.subr.bf16.mxu0 0
      %471 = vmatpush1.bf16.msra.mxu0 0
      %472 = vmatprep.subr.bf16.mxu0 0
      %473 = vmatpush1.bf16.msra.mxu0 0
      %474 = vmatprep.subr.bf16.mxu0 0
      %475 = vmatpush1.bf16.msra.mxu0 0
      %476 = vmatprep.subr.bf16.mxu0 0
      %477 = vmatpush1.bf16.msra.mxu0 0
      %478 = vmatprep.subr.bf16.mxu0 0
      %479 = vmatpush1.bf16.msra.mxu0 0
      %480 = vmatprep.subr.bf16.mxu0 0
      %481 = vmatpush1.bf16.msra.mxu0 0
      %482 = vmatprep.mubr.bf16.mxu0 0
      %483 = vmatmul.mubr.bf16.gmra.mrb[0].mxu0 %v448
      %v484 = vpop.f32.mrb[0].mxu0
      %v485 = vadd.f32 0.0, %v484
      %v486 = vpop.f32.mrb[0].mxu0
      %v487 = vpop.f32.mrb[0].mxu0
      %v488 = vpop.f32.mrb[0].mxu0
      %489 = vdwg.mxu0
      %v490 = vadd.f32 %v442, %v485
      %v491 = vmul.f32 %v490, 0.5
      %v492 = vtanh.pop %v491
      %v493 = vtanh.pop %v490
      %v494 = vadd.f32 %v492, 1.0
      %v495 = vmul.f32 %v494, 0.5
      %v496 = vmul.f32 %v495, %v440
      %498 = vrot.lane.b32.xlu0 %v493, 64
      %v499 = vpop.permute.xlu0 %498
      %v501 = vmul.f32 %v495, %v499
      %503 = vrot.lane.b32.xlu0 %v501, 32
      %v504 = vpop.permute.xlu0 %503
      %v506 = vadd.f32 %v496, %v504
      %v507 = vtanh.pop %v506
      %509 = vrot.lane.b32.xlu0 %v507, 64
      %v510 = vpop.permute.xlu0 %509
      %v512 = vmul.f32 %v495, %v510
      %s513 = sadd.s32 %s30, 3
      %v514 = vstv %s513
      %vm515 = vcmp.lt.s32.totalorder %v514, %v172
      %v516 = vsel %vm515, 1, 0
      %517 = vset.pattern.permute.xlu0 0
      %518 = vperm.xlu0 %517, %v516
      %v519 = vpop.permute.xlu0 %518
      %vm520 = vcmp.eq.s32.totalorder %v519, 1
      %v521 = vsel %vm520, %v512, %v439
      %v522 = vsel %vm520, %v506, %v440
      %s523 = scalar_lea.vmem [#allocation2], 32
      %v524 = vld [vmem:[%s523] sm:$0xff]
      %v525 = vpack.c.bf16 %v521, %v521
      %527 = vrot.lane.b32.xlu0 %v525, 32
      %v528 = vpop.permute.xlu0 %527
      %v530 = vsel %vm193, %v528, 0
      %532 = vmatprep.subr.bf16.mxu0 0
      %533 = vmatpush1.bf16.msra.mxu0 %v189
      %534 = vmatprep.subr.bf16.mxu0 0
      %535 = vmatpush1.bf16.msra.mxu0 %v190
      %536 = vmatprep.subr.bf16.mxu0 0
      %537 = vmatpush1.bf16.msra.mxu0 0
      %538 = vmatprep.subr.bf16.mxu0 0
      %539 = vmatpush1.bf16.msra.mxu0 0
      %540 = vmatprep.subr.bf16.mxu0 0
      %541 = vmatpush1.bf16.msra.mxu0 0
      %542 = vmatprep.subr.bf16.mxu0 0
      %543 = vmatpush1.bf16.msra.mxu0 0
      %544 = vmatprep.subr.bf16.mxu0 0
      %545 = vmatpush1.bf16.msra.mxu0 0
      %546 = vmatprep.subr.bf16.mxu0 0
      %547 = vmatpush1.bf16.msra.mxu0 0
      %548 = vmatprep.subr.bf16.mxu0 0
      %549 = vmatpush1.bf16.msra.mxu0 0
      %550 = vmatprep.subr.bf16.mxu0 0
      %551 = vmatpush1.bf16.msra.mxu0 0
      %552 = vmatprep.subr.bf16.mxu0 0
      %553 = vmatpush1.bf16.msra.mxu0 0
      %554 = vmatprep.subr.bf16.mxu0 0
      %555 = vmatpush1.bf16.msra.mxu0 0
      %556 = vmatprep.subr.bf16.mxu0 0
      %557 = vmatpush1.bf16.msra.mxu0 0
      %558 = vmatprep.subr.bf16.mxu0 0
      %559 = vmatpush1.bf16.msra.mxu0 0
      %560 = vmatprep.subr.bf16.mxu0 0
      %561 = vmatpush1.bf16.msra.mxu0 0
      %562 = vmatprep.subr.bf16.mxu0 0
      %563 = vmatpush1.bf16.msra.mxu0 0
      %564 = vmatprep.mubr.bf16.mxu0 0
      %565 = vmatmul.mubr.bf16.gmra.mrb[0].mxu0 %v530
      %v566 = vpop.f32.mrb[0].mxu0
      %v567 = vadd.f32 0.0, %v566
      %v568 = vpop.f32.mrb[0].mxu0
      %v569 = vpop.f32.mrb[0].mxu0
      %v570 = vpop.f32.mrb[0].mxu0
      %571 = vdwg.mxu0
      %v572 = vadd.f32 %v524, %v567
      %v573 = vmul.f32 %v572, 0.5
      %v574 = vtanh.pop %v573
      %v575 = vtanh.pop %v572
      %v576 = vadd.f32 %v574, 1.0
      %v577 = vmul.f32 %v576, 0.5
      %v578 = vmul.f32 %v577, %v522
      %580 = vrot.lane.b32.xlu0 %v575, 64
      %v581 = vpop.permute.xlu0 %580
      %v583 = vmul.f32 %v577, %v581
      %585 = vrot.lane.b32.xlu0 %v583, 32
      %v586 = vpop.permute.xlu0 %585
      %v588 = vadd.f32 %v578, %v586
      %v589 = vtanh.pop %v588
      %591 = vrot.lane.b32.xlu0 %v589, 64
      %v592 = vpop.permute.xlu0 %591
      %v594 = vmul.f32 %v577, %v592
      %s595 = sadd.s32 %s30, 4
      %v596 = vstv %s595
      %vm597 = vcmp.lt.s32.totalorder %v596, %v172
      %v598 = vsel %vm597, 1, 0
      %599 = vset.pattern.permute.xlu0 0
      %600 = vperm.xlu0 %599, %v598
      %v601 = vpop.permute.xlu0 %600
      %vm602 = vcmp.eq.s32.totalorder %v601, 1
      %v603 = vsel %vm602, %v594, %v521
      %v604 = vsel %vm602, %v588, %v522
      %s605 = scalar_lea.vmem [#allocation2], 40
      %v606 = vld [vmem:[%s605] sm:$0xff]
      %v607 = vpack.c.bf16 %v603, %v603
      %609 = vrot.lane.b32.xlu0 %v607, 32
      %v610 = vpop.permute.xlu0 %609
      %v612 = vsel %vm193, %v610, 0
      %614 = vmatprep.subr.bf16.mxu0 0
      %615 = vmatpush1.bf16.msra.mxu0 %v189
      %616 = vmatprep.subr.bf16.mxu0 0
      %617 = vmatpush1.bf16.msra.mxu0 %v190
      %618 = vmatprep.subr.bf16.mxu0 0
      %619 = vmatpush1.bf16.msra.mxu0 0
      %620 = vmatprep.subr.bf16.mxu0 0
      %621 = vmatpush1.bf16.msra.mxu0 0
      %622 = vmatprep.subr.bf16.mxu0 0
      %623 = vmatpush1.bf16.msra.mxu0 0
      %624 = vmatprep.subr.bf16.mxu0 0
      %625 = vmatpush1.bf16.msra.mxu0 0
      %626 = vmatprep.subr.bf16.mxu0 0
      %627 = vmatpush1.bf16.msra.mxu0 0
      %628 = vmatprep.subr.bf16.mxu0 0
      %629 = vmatpush1.bf16.msra.mxu0 0
      %630 = vmatprep.subr.bf16.mxu0 0
      %631 = vmatpush1.bf16.msra.mxu0 0
      %632 = vmatprep.subr.bf16.mxu0 0
      %633 = vmatpush1.bf16.msra.mxu0 0
      %634 = vmatprep.subr.bf16.mxu0 0
      %635 = vmatpush1.bf16.msra.mxu0 0
      %636 = vmatprep.subr.bf16.mxu0 0
      %637 = vmatpush1.bf16.msra.mxu0 0
      %638 = vmatprep.subr.bf16.mxu0 0
      %639 = vmatpush1.bf16.msra.mxu0 0
      %640 = vmatprep.subr.bf16.mxu0 0
      %641 = vmatpush1.bf16.msra.mxu0 0
      %642 = vmatprep.subr.bf16.mxu0 0
      %643 = vmatpush1.bf16.msra.mxu0 0
      %644 = vmatprep.subr.bf16.mxu0 0
      %645 = vmatpush1.bf16.msra.mxu0 0
      %646 = vmatprep.mubr.bf16.mxu0 0
      %647 = vmatmul.mubr.bf16.gmra.mrb[0].mxu0 %v612
      %v648 = vpop.f32.mrb[0].mxu0
      %v649 = vadd.f32 0.0, %v648
      %v650 = vpop.f32.mrb[0].mxu0
      %v651 = vpop.f32.mrb[0].mxu0
      %v652 = vpop.f32.mrb[0].mxu0
      %653 = vdwg.mxu0
      %v654 = vadd.f32 %v606, %v649
      %v655 = vmul.f32 %v654, 0.5
      %v656 = vtanh.pop %v655
      %v657 = vtanh.pop %v654
      %v658 = vadd.f32 %v656, 1.0
      %v659 = vmul.f32 %v658, 0.5
      %v660 = vmul.f32 %v659, %v604
      %662 = vrot.lane.b32.xlu0 %v657, 64
      %v663 = vpop.permute.xlu0 %662
      %v665 = vmul.f32 %v659, %v663
      %667 = vrot.lane.b32.xlu0 %v665, 32
      %v668 = vpop.permute.xlu0 %667
      %v670 = vadd.f32 %v660, %v668
      %v671 = vtanh.pop %v670
      %673 = vrot.lane.b32.xlu0 %v671, 64
      %v674 = vpop.permute.xlu0 %673
      %v676 = vmul.f32 %v659, %v674
      %s677 = sadd.s32 %s30, 5
      %v678 = vstv %s677
      %vm679 = vcmp.lt.s32.totalorder %v678, %v172
      %v680 = vsel %vm679, 1, 0
      %681 = vset.pattern.permute.xlu0 0
      %682 = vperm.xlu0 %681, %v680
      %v683 = vpop.permute.xlu0 %682
      %vm684 = vcmp.eq.s32.totalorder %v683, 1
      %v685 = vsel %vm684, %v676, %v603
      %v686 = vsel %vm684, %v670, %v604
      %s687 = scalar_lea.vmem [#allocation2], 48
      %v688 = vld [vmem:[%s687] sm:$0xff]
      %v689 = vpack.c.bf16 %v685, %v685
      %691 = vrot.lane.b32.xlu0 %v689, 32
      %v692 = vpop.permute.xlu0 %691
      %v694 = vsel %vm193, %v692, 0
      %696 = vmatprep.subr.bf16.mxu0 0
      %697 = vmatpush1.bf16.msra.mxu0 %v189
      %698 = vmatprep.subr.bf16.mxu0 0
      %699 = vmatpush1.bf16.msra.mxu0 %v190
      %700 = vmatprep.subr.bf16.mxu0 0
      %701 = vmatpush1.bf16.msra.mxu0 0
      %702 = vmatprep.subr.bf16.mxu0 0
      %703 = vmatpush1.bf16.msra.mxu0 0
      %704 = vmatprep.subr.bf16.mxu0 0
      %705 = vmatpush1.bf16.msra.mxu0 0
      %706 = vmatprep.subr.bf16.mxu0 0
      %707 = vmatpush1.bf16.msra.mxu0 0
      %708 = vmatprep.subr.bf16.mxu0 0
      %709 = vmatpush1.bf16.msra.mxu0 0
      %710 = vmatprep.subr.bf16.mxu0 0
      %711 = vmatpush1.bf16.msra.mxu0 0
      %712 = vmatprep.subr.bf16.mxu0 0
      %713 = vmatpush1.bf16.msra.mxu0 0
      %714 = vmatprep.subr.bf16.mxu0 0
      %715 = vmatpush1.bf16.msra.mxu0 0
      %716 = vmatprep.subr.bf16.mxu0 0
      %717 = vmatpush1.bf16.msra.mxu0 0
      %718 = vmatprep.subr.bf16.mxu0 0
      %719 = vmatpush1.bf16.msra.mxu0 0
      %720 = vmatprep.subr.bf16.mxu0 0
      %721 = vmatpush1.bf16.msra.mxu0 0
      %722 = vmatprep.subr.bf16.mxu0 0
      %723 = vmatpush1.bf16.msra.mxu0 0
      %724 = vmatprep.subr.bf16.mxu0 0
      %725 = vmatpush1.bf16.msra.mxu0 0
      %726 = vmatprep.subr.bf16.mxu0 0
      %727 = vmatpush1.bf16.msra.mxu0 0
      %728 = vmatprep.mubr.bf16.mxu0 0
      %729 = vmatmul.mubr.bf16.gmra.mrb[0].mxu0 %v694
      %v730 = vpop.f32.mrb[0].mxu0
      %v731 = vadd.f32 0.0, %v730
      %v732 = vpop.f32.mrb[0].mxu0
      %v733 = vpop.f32.mrb[0].mxu0
      %v734 = vpop.f32.mrb[0].mxu0
      %735 = vdwg.mxu0
      %v736 = vadd.f32 %v688, %v731
      %v737 = vmul.f32 %v736, 0.5
      %v738 = vtanh.pop %v737
      %v739 = vtanh.pop %v736
      %v740 = vadd.f32 %v738, 1.0
      %v741 = vmul.f32 %v740, 0.5
      %v742 = vmul.f32 %v741, %v686
      %744 = vrot.lane.b32.xlu0 %v739, 64
      %v745 = vpop.permute.xlu0 %744
      %v747 = vmul.f32 %v741, %v745
      %749 = vrot.lane.b32.xlu0 %v747, 32
      %v750 = vpop.permute.xlu0 %749
      %v752 = vadd.f32 %v742, %v750
      %v753 = vtanh.pop %v752
      %755 = vrot.lane.b32.xlu0 %v753, 64
      %v756 = vpop.permute.xlu0 %755
      %v758 = vmul.f32 %v741, %v756
      %s759 = sadd.s32 %s30, 6
      %v760 = vstv %s759
      %vm761 = vcmp.lt.s32.totalorder %v760, %v172
      %v762 = vsel %vm761, 1, 0
      %763 = vset.pattern.permute.xlu0 0
      %764 = vperm.xlu0 %763, %v762
      %v765 = vpop.permute.xlu0 %764
      %vm766 = vcmp.eq.s32.totalorder %v765, 1
      %v767 = vsel %vm766, %v758, %v685
      %v768 = vsel %vm766, %v752, %v686
      %s769 = scalar_lea.vmem [#allocation2], 56
      %v770 = vld [vmem:[%s769] sm:$0xff]
      %v771 = vpack.c.bf16 %v767, %v767
      %773 = vrot.lane.b32.xlu0 %v771, 32
      %v774 = vpop.permute.xlu0 %773
      %v776 = vsel %vm193, %v774, 0
      %778 = vmatprep.subr.bf16.mxu0 0
      %779 = vmatpush1.bf16.msra.mxu0 %v189
      %780 = vmatprep.subr.bf16.mxu0 0
      %781 = vmatpush1.bf16.msra.mxu0 %v190
      %782 = vmatprep.subr.bf16.mxu0 0
      %783 = vmatpush1.bf16.msra.mxu0 0
      %784 = vmatprep.subr.bf16.mxu0 0
      %785 = vmatpush1.bf16.msra.mxu0 0
      %786 = vmatprep.subr.bf16.mxu0 0
      %787 = vmatpush1.bf16.msra.mxu0 0
      %788 = vmatprep.subr.bf16.mxu0 0
      %789 = vmatpush1.bf16.msra.mxu0 0
      %790 = vmatprep.subr.bf16.mxu0 0
      %791 = vmatpush1.bf16.msra.mxu0 0
      %792 = vmatprep.subr.bf16.mxu0 0
      %793 = vmatpush1.bf16.msra.mxu0 0
      %794 = vmatprep.subr.bf16.mxu0 0
      %795 = vmatpush1.bf16.msra.mxu0 0
      %796 = vmatprep.subr.bf16.mxu0 0
      %797 = vmatpush1.bf16.msra.mxu0 0
      %798 = vmatprep.subr.bf16.mxu0 0
      %799 = vmatpush1.bf16.msra.mxu0 0
      %800 = vmatprep.subr.bf16.mxu0 0
      %801 = vmatpush1.bf16.msra.mxu0 0
      %802 = vmatprep.subr.bf16.mxu0 0
      %803 = vmatpush1.bf16.msra.mxu0 0
      %804 = vmatprep.subr.bf16.mxu0 0
      %805 = vmatpush1.bf16.msra.mxu0 0
      %806 = vmatprep.subr.bf16.mxu0 0
      %807 = vmatpush1.bf16.msra.mxu0 0
      %808 = vmatprep.subr.bf16.mxu0 0
      %809 = vmatpush1.bf16.msra.mxu0 0
      %810 = vmatprep.mubr.bf16.mxu0 0
      %811 = vmatmul.mubr.bf16.gmra.mrb[0].mxu0 %v776
      %v812 = vpop.f32.mrb[0].mxu0
      %v813 = vadd.f32 0.0, %v812
      %v814 = vpop.f32.mrb[0].mxu0
      %v815 = vpop.f32.mrb[0].mxu0
      %v816 = vpop.f32.mrb[0].mxu0
      %817 = vdwg.mxu0
      %v818 = vadd.f32 %v770, %v813
      %v819 = vmul.f32 %v818, 0.5
      %v820 = vtanh.pop %v819
      %v821 = vtanh.pop %v818
      %v822 = vadd.f32 %v820, 1.0
      %v823 = vmul.f32 %v822, 0.5
      %v824 = vmul.f32 %v823, %v768
      %826 = vrot.lane.b32.xlu0 %v821, 64
      %v827 = vpop.permute.xlu0 %826
      %v829 = vmul.f32 %v823, %v827
      %831 = vrot.lane.b32.xlu0 %v829, 32
      %v832 = vpop.permute.xlu0 %831
      %v834 = vadd.f32 %v824, %v832
      %v835 = vtanh.pop %v834
      %837 = vrot.lane.b32.xlu0 %v835, 64
      %v838 = vpop.permute.xlu0 %837
      %v840 = vmul.f32 %v823, %v838
      %s841 = sadd.s32 %s30, 7
      %v842 = vstv %s841
      %vm843 = vcmp.lt.s32.totalorder %v842, %v172
      %v844 = vsel %vm843, 1, 0
      %845 = vset.pattern.permute.xlu0 0
      %846 = vperm.xlu0 %845, %v844
      %v847 = vpop.permute.xlu0 %846
      %vm848 = vcmp.eq.s32.totalorder %v847, 1
      %v849 = vsel %vm848, %v840, %v767
      %v850 = vsel %vm848, %v834, %v768
      %852 = vrot.lane.b32.xlu0 %v849, 32
      %v853 = vpop.permute.xlu0 %852
      %855 = vst.msk [vmem:[#allocation3] sm:$0xff] %vm193, %v853
      %857 = vrot.lane.b32.xlu0 %v850, 96
      %v858 = vpop.permute.xlu0 %857
      %860 = vst.msk [vmem:[#allocation4] sm:$0xff] %vm193, %v858
    $region37: #{tpu_custom_call.1} parent=1 // pred_fallthru
      _
    // Predicated region
    $region38: #{tpu_custom_call.1} parent=1 // pred_check
      %p861 = pneg %p32
    $region39: #{tpu_custom_call.1} parent=1 // pred_check_branch
      %863 = sbr.rel (%p861) target = $region41
    $region40: #{tpu_custom_call.1} parent=1 // pred_region
      %v864 = vld [vmem:[#allocation3] sm:$0xff]
      %v865 = vpack.c.bf16 %v864, %v864
      %v866 = vld [vmem:[%s6] sm:$0xf]
      %v867 = vld [vmem:[%s6 + $0x4] sm:$0xf]
      %v868 = vld [vmem:[%s6 + $0x8] sm:$0xf]
      %v869 = vld [vmem:[%s6 + $0xc] sm:$0xf]
      %v870 = vld [vmem:[%s7] sm:$0x1]
      %v872 = vlaneseq
      %v873 = vshrl.u32 %v872, 7
      %v874 = vsub.s32 0, %v873
      %v875 = vrot.slane %v870, %v874
      %v881 = vunpack.c.l.b16 %v866
      %v882 = vunpack.c.l.b16 %v867
      %v883 = vunpack.c.l.b16 %v868
      %v884 = vunpack.c.l.b16 %v869
      %v885 = vpack.c.b16 %v882, %v881
      %v886 = vpack.c.b16 %v884, %v883
      %vm889 = vcmask 261120
      %v891 = vsel %vm889, %v865, 0
      %893 = vmatprep.subr.bf16.mxu0 0
      %894 = vmatpush1.bf16.msra.mxu0 %v885
      %895 = vmatprep.subr.bf16.mxu0 0
      %896 = vmatpush1.bf16.msra.mxu0 %v886
      %897 = vmatprep.subr.bf16.mxu0 0
      %898 = vmatpush1.bf16.msra.mxu0 0
      %899 = vmatprep.subr.bf16.mxu0 0
      %900 = vmatpush1.bf16.msra.mxu0 0
      %901 = vmatprep.subr.bf16.mxu0 0
      %902 = vmatpush1.bf16.msra.mxu0 0
      %903 = vmatprep.subr.bf16.mxu0 0
      %904 = vmatpush1.bf16.msra.mxu0 0
      %905 = vmatprep.subr.bf16.mxu0 0
      %906 = vmatpush1.bf16.msra.mxu0 0
      %907 = vmatprep.subr.bf16.mxu0 0
      %908 = vmatpush1.bf16.msra.mxu0 0
      %909 = vmatprep.subr.bf16.mxu0 0
      %910 = vmatpush1.bf16.msra.mxu0 0
      %911 = vmatprep.subr.bf16.mxu0 0
      %912 = vmatpush1.bf16.msra.mxu0 0
      %913 = vmatprep.subr.bf16.mxu0 0
      %914 = vmatpush1.bf16.msra.mxu0 0
      %915 = vmatprep.subr.bf16.mxu0 0
      %916 = vmatpush1.bf16.msra.mxu0 0
      %917 = vmatprep.subr.bf16.mxu0 0
      %918 = vmatpush1.bf16.msra.mxu0 0
      %919 = vmatprep.subr.bf16.mxu0 0
      %920 = vmatpush1.bf16.msra.mxu0 0
      %921 = vmatprep.subr.bf16.mxu0 0
      %922 = vmatpush1.bf16.msra.mxu0 0
      %923 = vmatprep.subr.bf16.mxu0 0
      %924 = vmatpush1.bf16.msra.mxu0 0
      %925 = vmatprep.mubr.bf16.mxu0 0
      %926 = vmatmul.mubr.bf16.gmra.mrb[0].mxu0 %v891
      %v927 = vpop.f32.mrb[0].mxu0
      %v928 = vadd.f32 %v875, %v927
      %v929 = vpop.f32.mrb[0].mxu0
      %v930 = vpop.f32.mrb[0].mxu0
      %v931 = vpop.f32.mrb[0].mxu0
      %932 = vdwg.mxu0
      %933 = vst [vmem:[#allocation7] sm:$0xff] %v928
    $region41: #{tpu_custom_call.1} parent=1 // pred_fallthru
      _
    // Predicated region
    $region42: #{tpu_custom_call.1} parent=1 // pred_check
      _
    $region43: #{tpu_custom_call.1} parent=1 // pred_check_branch
      %935 = sbr.rel (0) target = $region45
    $region44: #{tpu_custom_call.1} parent=1 // pred_region
      %s937 = ssub.s32 128, 128
      %938 = vsyncadd [#allocation8], %s937
      %s940 = sshll.u32 [#allocation7], 4
      %s941 = int_to_ptr.vmem [resolvable:$true] %s940
      %943 = dma.vmem_to_hbm [thread:$0]  %s941, 128, %s8, [#allocation8]
    $region45: #{tpu_custom_call.1} parent=1 // pred_fallthru
      _
    // Predicated region
    $region46: #{tpu_custom_call.1} parent=1 // pred_check
      _
    $region47: #{tpu_custom_call.1} parent=1 // pred_check_branch
      %945 = sbr.rel (0) target = $region49
    $region48: #{tpu_custom_call.1} parent=1 // pred_region
      %946 = dma.done [#allocation8], 128
    $region49: #{tpu_custom_call.1} parent=1 // pred_fallthru
      _
    %947 = vsyncpa [#allocation8], 1

</llo_original>
